<compile_context>
chip_gen: v6e
topology: v6e:2x2x1
jax: 0.10.0
libtpu: 0.0.40
codegen_flags: <defaults>
</compile_context>

<pallas_src>
import functools
import math

import jax
import jax.numpy as jnp
from jax.experimental import pallas as pl
from jax.experimental.pallas import tpu as pltpu

LANE = 128       # feature dims padded to a multiple of the lane width
TILE_M = 128     # dst-row tile (rows of A / rows of the output)
TILE_K = 128     # src-row tile (cols of A / rows of Wh); == TILE_M so the
                 # visited padded regions line up between the two layers.


def _round_up(x, m):
    return ((x + m - 1) // m) * m


def _cdiv(a, b):
    return (a + b - 1) // b


def _pad2d(x, rows, cols):
    r, c = x.shape
    return jnp.pad(x, ((0, rows - r), (0, cols - c)))


def _vmem_limit_bytes():
    # Size the VMEM budget per TPU generation (64 MiB physical per core on
    # v7x, 128 MiB on v5e/v6e) and leave headroom for Mosaic's own scratch.
    try:
        cap = pltpu.get_tpu_info().vmem_capacity_bytes
    except Exception:
        cap = 64 * 1024 * 1024
    return max(32 * 1024 * 1024, min(cap * 3 // 4, 96 * 1024 * 1024))


# ----------------------------------------------------------------------------
# Fused HeteroRGCNLayer kernel (one grid step == one (relation, m, k) triple)
# ----------------------------------------------------------------------------
def _hetero_layer_kernel(meta_ref, a_ref, x_ref, w_ref, b_ref, inv_ref,
                         o_ref, acc_ref, *, apply_act):
    """meta_ref (SMEM int32[7, T]):
         0: relation index     1: x-stack slot (src ntype)   2: dst ntype slot
         3: dst-row tile m     4: src-row tile k
         5: first step of this (dst, m) run     6: last step of the run
       a_ref  : (TILE_M, TILE_K)  bf16 exact 0/1 adjacency tile (dst x src)
       x_ref  : (TILE_K, Fin_pad) bf16 source-feature slab
       w_ref  : (Fin_pad, TN)     bf16 per-etype Linear weight (f_out tile)
       b_ref  : (1, TN)           f32  per-etype Linear bias
       inv_ref: (TILE_M, 1)       f32  per-(relation, dst row) 1/in-degree
       o_ref  : (TILE_M, TN)      layer output tile (bf16 between layers)
       acc_ref: (TILE_M, TN)      f32 VMEM accumulator (persists across steps)
    """
    t = pl.program_id(1)
    is_first = meta_ref[5, t] == 1
    is_last = meta_ref[6, t] == 1

    # Wh slab for this src-row tile (bf16 MXU inputs, f32 accumulation).
    # Padded X rows yield wh == b; they are cancelled by A's all-zero padded
    # columns (padding is always zero by construction).
    wh = jnp.dot(x_ref[...], w_ref[...], preferred_element_type=jnp.float32)
    wh = wh + b_ref[...]

    # (copy_u, mean): exact 0/1 adjacency matmul on the MXU, f32 inverse-degree
    # row scale applied afterwards on the VPU (hidden under the MXU).
    contrib = jnp.dot(a_ref[...], wh.astype(jnp.bfloat16),
                      preferred_element_type=jnp.float32)
    contrib = contrib * inv_ref[...]

    @pl.when(is_first)
    def _():
        acc_ref[...] = contrib               # write-on-first (no zero store)

    @pl.when(jnp.logical_not(is_first))
    def _():
        acc_ref[...] += contrib              # src-tile + cross-etype 'sum'

    @pl.when(is_last)
    def _():
        h = acc_ref[...]
        if apply_act:                        # fused F.leaky_relu (layer 1)
            h = jnp.where(h >= 0.0, h, 0.01 * h)
        o_ref[...] = h.astype(o_ref.dtype)


# ----------------------------------------------------------------------------
# Graph-level plan shared by both layers (ordering, schedule, A / 1/deg stacks)
# ----------------------------------------------------------------------------
def build_plan(graph, tm=TILE_M, tk=TILE_K):
    cets = graph["canonical_etypes"]
    ntype_sizes = graph["ntype_sizes"]
    n_pad = _round_up(max(ntype_sizes.values()), LANE)

    dst_types, src_types = [], []
    for (_, _, d) in cets:
        if d not in dst_types:
            dst_types.append(d)
    for (s, _, _) in cets:
        if s not in src_types:
            src_types.append(s)

    # Relations sorted by (dst group, src type): dst contiguity keeps the
    # accumulator resident, the secondary src key lets Pallas skip duplicate
    # X-block DMAs on consecutive steps.
    ordered = sorted(cets, key=lambda c: (dst_types.index(c[2]),
                                          src_types.index(c[0])))

    # Flat-step schedule: for each dst group, for each dst-row tile m, walk all
    # (relation, src-row tile k) pairs of that group.  Per-type tile counts
    # skip all-zero adjacency tiles (work proportional to real node counts).
    cols = {k: [] for k in ("rel", "src", "dst", "m", "k", "first", "last")}
    groups = {}
    for ri, (s, e, d) in enumerate(ordered):
        groups.setdefault(dst_types.index(d), []).append(ri)
    for d_id in range(len(dst_types)):
        m_tiles = _cdiv(ntype_sizes[dst_types[d_id]], tm)
        for m in range(m_tiles):
            inner = []
            for ri in groups[d_id]:
                s_name = ordered[ri][0]
                for k in range(_cdiv(ntype_sizes[s_name], tk)):
                    inner.append((ri, src_types.index(s_name), m, k))
            for i, (ri, s_id, m_, k_) in enumerate(inner):
                cols["rel"].append(ri)
                cols["src"].append(s_id)
                cols["dst"].append(d_id)
                cols["m"].append(m_)
                cols["k"].append(k_)
                cols["first"].append(1 if i == 0 else 0)
                cols["last"].append(1 if i == len(inner) - 1 else 0)

    # Contiguity sanity check: every (dst, m) accumulation run must be one
    # contiguous [first .. last] span, otherwise the resident scratch/output
    # block would silently drop earlier contributions.
    run_key = None
    for i in range(len(cols["rel"])):
        if cols["first"][i]:
            run_key = (cols["dst"][i], cols["m"][i])
        assert (cols["dst"][i], cols["m"][i]) == run_key
        if cols["last"][i]:
            run_key = None
    assert run_key is None

    # Exact 0/1 adjacency in bf16 + f32 inverse in-degree for the mean reduce.
    a_stack = jnp.stack(
        [_pad2d(graph["adj"][cet], n_pad, n_pad) for cet in ordered]
    ).astype(jnp.bfloat16)
    inv_list = []
    for cet in ordered:
        deg = graph["adj"][cet].sum(axis=1, keepdims=True)
        inv_list.append(jnp.where(deg > 0, 1.0 / deg, 0.0))
    inv_stack = jnp.stack(
        [_pad2d(v, n_pad, 1) for v in inv_list]
    ).astype(jnp.float32)

    return dict(ordered=ordered, src_types=src_types, dst_types=dst_types,
                n_pad=n_pad, a_stack=a_stack, inv_stack=inv_stack, sched=cols)


# ----------------------------------------------------------------------------
# One HeteroRGCNLayer (+ optional fused leaky_relu) as a single pallas_call
# ----------------------------------------------------------------------------
def hetero_layer_pallas(plan, x_stack, x_slot_of_src, layer_params, out_size,
                        *, apply_act, out_dtype):
    ordered = plan["ordered"]
    dst_types = plan["dst_types"]
    n_pad = plan["n_pad"]

    n_types, n_rows, f_in_pad = x_stack.shape
    assert n_rows == n_pad and f_in_pad % LANE == 0
    # TODO(synk): tile f_in as well once input feature widths exceed VMEM-sized slabs.

    f_out_pad = _round_up(out_size, LANE)
    # f_out tile: 256 fills the 2x256 MXU on v6e/v7x when it divides f_out_pad;
    # this axis is also the megacore "parallel" axis on v7x.
    tn = 256 if f_out_pad % 256 == 0 else 128
    n_out_tiles = f_out_pad // tn

    sched = plan["sched"]
    src_remapped = [x_slot_of_src[s] for s in sched["src"]]
    meta = jnp.array([sched["rel"], src_remapped, sched["dst"],
                      sched["m"], sched["k"], sched["first"], sched["last"]],
                     dtype=jnp.int32)
    num_steps = meta.shape[1]

    w_stack = jnp.stack(
        [_pad2d(layer_params[e][0], f_in_pad, f_out_pad) for (_, e, _) in ordered]
    ).astype(jnp.bfloat16)
    b_stack = jnp.stack(
        [_pad2d(layer_params[e][1], 1, f_out_pad) for (_, e, _) in ordered]
    ).astype(jnp.float32)

    h_stack = pl.pallas_call(
        functools.partial(_hetero_layer_kernel, apply_act=apply_act),
        out_shape=jax.ShapeDtypeStruct((len(dst_types), n_pad, f_out_pad),
                                       out_dtype),
        grid_spec=pltpu.PrefetchScalarGridSpec(
            num_scalar_prefetch=1,
            grid=(n_out_tiles, num_steps),
            in_specs=[
                # A tile: (relation, m, k)
                pl.BlockSpec((None, TILE_M, TILE_K),
                             lambda j, t, md: (md[0, t], md[3, t], md[4, t])),
                # X slab: (src slot, k, full f_in)
                pl.BlockSpec((None, TILE_K, f_in_pad),
                             lambda j, t, md: (md[1, t], md[4, t], 0)),
                # W tile: (relation, full f_in, f_out tile j)
                pl.BlockSpec((None, f_in_pad, tn),
                             lambda j, t, md: (md[0, t], 0, j)),
                # bias: (relation, 1, f_out tile j)
                pl.BlockSpec((None, 1, tn),
                             lambda j, t, md: (md[0, t], 0, j)),
                # 1/deg column: (relation, m, 0)
                pl.BlockSpec((None, TILE_M, 1),
                             lambda j, t, md: (md[0, t], md[3, t], 0)),
            ],
            out_specs=pl.BlockSpec((None, TILE_M, tn),
                                   lambda j, t, md: (md[2, t], md[3, t], j)),
            scratch_shapes=[pltpu.VMEM((TILE_M, tn), jnp.float32)],
        ),
        compiler_params=pltpu.CompilerParams(
            # f_out tiles are independent (megacore on v7x); the flat-step axis
            # carries the accumulation / output-block residency -> arbitrary.
            dimension_semantics=("parallel", "arbitrary"),
            vmem_limit_bytes=_vmem_limit_bytes(),
        ),
    )(meta, plan["a_stack"], x_stack, w_stack, b_stack, plan["inv_stack"])
    return h_stack


# ----------------------------------------------------------------------------
# HeteroRGCN forward: two fused layer kernels, bf16 padded stack between them
# ----------------------------------------------------------------------------
def hetero_rgcn_forward(graph, params, hidden_size, out_size, out_key):
    plan = build_plan(graph)
    src_types, dst_types = plan["src_types"], plan["dst_types"]
    n_pad = plan["n_pad"]

    in_size = next(iter(graph["inp"].values())).shape[1]
    f_in_pad = _round_up(in_size, LANE)

    # Layer-1 input: padded, stacked, bf16 (lane-dense MXU operand).
    x0 = jnp.stack(
        [_pad2d(graph["inp"][s], n_pad, f_in_pad) for s in src_types]
    ).astype(jnp.bfloat16)
    h1 = hetero_layer_pallas(plan, x0, list(range(len(src_types))),
                             params["layer1"], hidden_size,
                             apply_act=True, out_dtype=jnp.bfloat16)

    # Layer-2 input: layer-1's output is consumed directly in its padded,
    # stacked bf16 layout; the src-ntype -> stack-slot indirection is folded
    # into the scalar-prefetch metadata (no HBM slice/re-pad/cast round trip).
    for s in src_types:
        assert s in dst_types, f"ntype {s!r} has no layer-1 output"
    slots = [dst_types.index(s) for s in src_types]
    h2 = hetero_layer_pallas(plan, h1, slots, params["layer2"], out_size,
                             apply_act=False, out_dtype=jnp.float32)

    d = dst_types.index(out_key)
    return h2[d, :graph["ntype_sizes"][out_key], :out_size]


# ----------------------------------------------------------------------------
# Pure-JAX references (semantics check)
# ----------------------------------------------------------------------------
def _reference_layer(graph, feat, lp, *, bf16):
    acc = {}
    for (s, e, d) in graph["canonical_etypes"]:
        w, b = lp[e]
        x, a = feat[s], graph["adj"][(s, e, d)]
        deg = a.sum(axis=1, keepdims=True)
        inv = jnp.where(deg > 0, 1.0 / deg, 0.0)
        if bf16:   # mirrors the kernel's bf16-MXU-input / f32-accumulate path
            wh = jnp.dot(x.astype(jnp.bfloat16), w.astype(jnp.bfloat16),
                         preferred_element_type=jnp.float32) + b
            contrib = jnp.dot(a.astype(jnp.bfloat16), wh.astype(jnp.bfloat16),
                              preferred_element_type=jnp.float32) * inv
        else:
            contrib = (a @ (x @ w + b)) * inv
        acc[d] = contrib if d not in acc else acc[d] + contrib
    return acc


def hetero_rgcn_reference(graph, params, out_key, *, bf16):
    h = _reference_layer(graph, graph["inp"], params["layer1"], bf16=bf16)
    h = {k: jnp.where(v >= 0, v, 0.01 * v) for k, v in h.items()}
    if bf16:   # kernel keeps the inter-layer activations in bf16
        h = {k: v.astype(jnp.bfloat16).astype(jnp.float32) for k, v in h.items()}
    h = _reference_layer(graph, h, params["layer2"], bf16=bf16)
    return h[out_key]


# ----------------------------------------------------------------------------
# Deterministic parameter / synthetic graph construction
# ----------------------------------------------------------------------------
def init_linear(key, in_size, out_size):
    # Mimic nn.Linear default init: U(-1/sqrt(in), 1/sqrt(in)) for W and b.
    kw, kb = jax.random.split(key)
    bound = 1.0 / math.sqrt(in_size)
    w = jax.random.uniform(kw, (in_size, out_size), jnp.float32, -bound, bound)
    b = jax.random.uniform(kb, (1, out_size), jnp.float32, -bound, bound)
    return w, b


def build_graph(key, ntype_sizes, canonical_etypes, in_size):
    """Dense synthetic heterograph: exact 0/1 adjacency (dst x src)."""
    adj, inp = {}, {}
    keys = jax.random.split(key, len(canonical_etypes) + len(ntype_sizes))
    for i, (s, e, d) in enumerate(canonical_etypes):
        adj[(s, e, d)] = (
            jax.random.uniform(keys[i], (ntype_sizes[d], ntype_sizes[s])) < 0.35
        ).astype(jnp.float32)
    for j, (nt, n) in enumerate(ntype_sizes.items()):
        inp[nt] = jax.random.normal(keys[len(canonical_etypes) + j],
                                    (n, in_size), jnp.float32)
    return {
        "ntypes": list(ntype_sizes.keys()),
        "ntype_sizes": dict(ntype_sizes),
        "canonical_etypes": list(canonical_etypes),
        "adj": adj,
        "inp": inp,
    }


if __name__ == "__main__":
    in_size, hidden_size, out_size = 32, 32, 8
    ntype_sizes = {"user": 10, "item": 12, "tag": 6}
    canonical_etypes = [
        ("user", "follows", "user"),
        ("user", "clicks", "item"),
        ("item", "tagged_as", "tag"),
        ("tag", "describes", "item"),
    ]
    etypes = [e for (_, e, _) in canonical_etypes]

    root = jax.random.PRNGKey(0)
    kg, k1, k2 = jax.random.split(root, 3)
    graph = build_graph(kg, ntype_sizes, canonical_etypes, in_size)

    k1s = jax.random.split(k1, len(etypes))
    k2s = jax.random.split(k2, len(etypes))
    params = {
        "layer1": {e: init_linear(k1s[i], in_size, hidden_size)
                   for i, e in enumerate(etypes)},
        "layer2": {e: init_linear(k2s[i], hidden_size, out_size)
                   for i, e in enumerate(etypes)},
    }

    out_key = "item"
    out = jax.block_until_ready(
        hetero_rgcn_forward(graph, params, hidden_size, out_size, out_key))
    assert out.shape == (ntype_sizes[out_key], out_size)

    # Tight check vs. a reference that applies the same bf16 MXU-input casts.
    ref_bf16 = jax.block_until_ready(
        hetero_rgcn_reference(graph, params, out_key, bf16=True))
    assert jnp.allclose(out, ref_bf16, rtol=1e-3, atol=1e-3), \
        "Pallas output != bf16-matched JAX reference"

    # Looser check vs. the pure-f32 reference (bf16 input quantization only).
    ref_f32 = jax.block_until_ready(
        hetero_rgcn_reference(graph, params, out_key, bf16=False))
    assert jnp.allclose(out, ref_f32, rtol=2e-2, atol=2e-2), \
        "Pallas output != f32 JAX reference (beyond expected bf16 tolerance)"

    print("KERNEL_OK")
</pallas_src>

<mosaic_0001>
module attributes {stable_mosaic.version = 11 : i64} {
  func.func @_hetero_layer_kernel(%arg0: i32, %arg1: i32, %arg2: memref<7x4xi32, #tpu.memory_space<smem>>, %arg3: memref<1x128x128xbf16, #tpu.memory_space<vmem>>, %arg4: memref<1x128x128xbf16, #tpu.memory_space<vmem>>, %arg5: memref<1x128x128xbf16, #tpu.memory_space<vmem>>, %arg6: memref<1x1x128xf32, #tpu.memory_space<vmem>>, %arg7: memref<1x128x1xf32, #tpu.memory_space<vmem>>, %arg8: memref<1x128x128xbf16, #tpu.memory_space<vmem>>, %arg9: memref<128x128xf32, #tpu.memory_space<vmem>>) attributes {dimension_semantics = [#tpu.dimension_semantics<parallel>, #tpu.dimension_semantics<arbitrary>], iteration_bounds = array<i64: 1, 4>, scalar_prefetch = 1 : i64, scratch_operands = 1 : i64, tpu.core_type = #tpu.core_type<tc>, window_params = [{transform_indices = @transform_0, window_bounds = array<i64: 1, 128, 128>}, {transform_indices = @transform_1, window_bounds = array<i64: 1, 128, 128>}, {transform_indices = @transform_2, window_bounds = array<i64: 1, 128, 128>}, {transform_indices = @transform_3, window_bounds = array<i64: 1, 1, 128>}, {transform_indices = @transform_4, window_bounds = array<i64: 1, 128, 1>}, {transform_indices = @transform_5, window_bounds = array<i64: 1, 128, 128>}]} {
    %c5 = arith.constant 5 : index
    %0 = arith.index_cast %arg1 : i32 to index
    %1 = memref.load %arg2[%c5, %0] : memref<7x4xi32, #tpu.memory_space<smem>>
    %c1_i32 = arith.constant 1 : i32
    %2 = arith.cmpi eq, %1, %c1_i32 : i32
    %c6 = arith.constant 6 : index
    %3 = arith.index_cast %arg1 : i32 to index
    %4 = memref.load %arg2[%c6, %3] : memref<7x4xi32, #tpu.memory_space<smem>>
    %c1_i32_0 = arith.constant 1 : i32
    %5 = arith.cmpi eq, %4, %c1_i32_0 : i32
    %c0 = arith.constant 0 : index
    %c0_1 = arith.constant 0 : index
    %c0_2 = arith.constant 0 : index
    %6 = vector.load %arg4[%c0, %c0_1, %c0_2] : memref<1x128x128xbf16, #tpu.memory_space<vmem>>, vector<1x128x128xbf16>
    %7 = vector.shape_cast %6 : vector<1x128x128xbf16> to vector<128x128xbf16>
    %c0_3 = arith.constant 0 : index
    %c0_4 = arith.constant 0 : index
    %c0_5 = arith.constant 0 : index
    %8 = vector.load %arg5[%c0_3, %c0_4, %c0_5] : memref<1x128x128xbf16, #tpu.memory_space<vmem>>, vector<1x128x128xbf16>
    %9 = vector.shape_cast %8 : vector<1x128x128xbf16> to vector<128x128xbf16>
    %cst = arith.constant dense<0.000000e+00> : vector<128x128xf32>
    %10 = tpu.matmul %7, %9, %cst {dimension_numbers = #tpu.dot_dimension_numbers<[1], [0], [0], [1], [0, 0, 1, 1], [], []>} : vector<128x128xbf16>, vector<128x128xbf16>, vector<128x128xf32> -> vector<128x128xf32>
    %c0_6 = arith.constant 0 : index
    %c0_7 = arith.constant 0 : index
    %c0_8 = arith.constant 0 : index
    %11 = vector.load %arg6[%c0_6, %c0_7, %c0_8] : memref<1x1x128xf32, #tpu.memory_space<vmem>>, vector<1x1x128xf32>
    %12 = vector.shape_cast %11 : vector<1x1x128xf32> to vector<1x128xf32>
    %13 = vector.broadcast %12 : vector<1x128xf32> to vector<128x128xf32>
    %14 = arith.addf %10, %13 : vector<128x128xf32>
    %c0_9 = arith.constant 0 : index
    %c0_10 = arith.constant 0 : index
    %c0_11 = arith.constant 0 : index
    %15 = vector.load %arg3[%c0_9, %c0_10, %c0_11] : memref<1x128x128xbf16, #tpu.memory_space<vmem>>, vector<1x128x128xbf16>
    %16 = vector.shape_cast %15 : vector<1x128x128xbf16> to vector<128x128xbf16>
    %17 = arith.truncf %14 : vector<128x128xf32> to vector<128x128xbf16>
    %cst_12 = arith.constant dense<0.000000e+00> : vector<128x128xf32>
    %18 = tpu.matmul %16, %17, %cst_12 {dimension_numbers = #tpu.dot_dimension_numbers<[1], [0], [0], [1], [0, 0, 1, 1], [], []>} : vector<128x128xbf16>, vector<128x128xbf16>, vector<128x128xf32> -> vector<128x128xf32>
    %c0_13 = arith.constant 0 : index
    %c0_14 = arith.constant 0 : index
    %c0_15 = arith.constant 0 : index
    %19 = vector.load %arg7[%c0_13, %c0_14, %c0_15] : memref<1x128x1xf32, #tpu.memory_space<vmem>>, vector<1x128x1xf32>
    %20 = vector.shape_cast %19 : vector<1x128x1xf32> to vector<128x1xf32>
    %21 = vector.broadcast %20 : vector<128x1xf32> to vector<128x128xf32>
    %22 = arith.mulf %18, %21 : vector<128x128xf32>
    %23 = arith.extui %2 : i1 to i32
    %c0_i32 = arith.constant 0 : i32
    %24 = arith.cmpi ne, %23, %c0_i32 : i32
    scf.if %24 {
      %c0_18 = arith.constant 0 : index
      %c0_19 = arith.constant 0 : index
      %30 = vector.load %arg9[%c0_18, %c0_19] : memref<128x128xf32, #tpu.memory_space<vmem>>, vector<128x128xf32>
      tpu.vector_store %arg9[%c0_18, %c0_19], %22 {strides = array<i32>} : memref<128x128xf32, #tpu.memory_space<vmem>>, vector<128x128xf32>,
    } else {
    }
    %true = arith.constant true
    %25 = arith.xori %2, %true : i1
    %26 = arith.extui %25 : i1 to i32
    %c0_i32_16 = arith.constant 0 : i32
    %27 = arith.cmpi ne, %26, %c0_i32_16 : i32
    scf.if %27 {
      %c0_18 = arith.constant 0 : index
      %c0_19 = arith.constant 0 : index
      %30 = vector.load %arg9[%c0_18, %c0_19] : memref<128x128xf32, #tpu.memory_space<vmem>>, vector<128x128xf32>
      %31 = arith.addf %30, %22 : vector<128x128xf32>
      %c0_20 = arith.constant 0 : index
      %c0_21 = arith.constant 0 : index
      %32 = vector.load %arg9[%c0_20, %c0_21] : memref<128x128xf32, #tpu.memory_space<vmem>>, vector<128x128xf32>
      tpu.vector_store %arg9[%c0_20, %c0_21], %31 {strides = array<i32>} : memref<128x128xf32, #tpu.memory_space<vmem>>, vector<128x128xf32>,
    } else {
    }
    %28 = arith.extui %5 : i1 to i32
    %c0_i32_17 = arith.constant 0 : i32
    %29 = arith.cmpi ne, %28, %c0_i32_17 : i32
    scf.if %29 {
      %c0_18 = arith.constant 0 : index
      %c0_19 = arith.constant 0 : index
      %30 = vector.load %arg9[%c0_18, %c0_19] : memref<128x128xf32, #tpu.memory_space<vmem>>, vector<128x128xf32>
      %cst_20 = arith.constant 0.000000e+00 : f32
      %31 = vector.broadcast %cst_20 : f32 to vector<128x128xf32>
      %32 = arith.cmpf oge, %30, %31 : vector<128x128xf32>
      %cst_21 = arith.constant 0.00999999977 : f32
      %33 = vector.broadcast %cst_21 : f32 to vector<128x128xf32>
      %34 = arith.mulf %33, %30 : vector<128x128xf32>
      %35 = arith.select %32, %30, %34 : vector<128x128xi1>, vector<128x128xf32>
      %36 = arith.truncf %35 : vector<128x128xf32> to vector<128x128xbf16>
      %c0_22 = arith.constant 0 : index
      %c0_23 = arith.constant 0 : index
      %c0_24 = arith.constant 0 : index
      %37 = vector.load %arg8[%c0_22, %c0_23, %c0_24] : memref<1x128x128xbf16, #tpu.memory_space<vmem>>, vector<1x128x128xbf16>
      %38 = vector.shape_cast %37 : vector<1x128x128xbf16> to vector<128x128xbf16>
      %39 = vector.shape_cast %36 : vector<128x128xbf16> to vector<1x128x128xbf16>
      tpu.vector_store %arg8[%c0_22, %c0_23, %c0_24], %39 {strides = array<i32>} : memref<1x128x128xbf16, #tpu.memory_space<vmem>>, vector<1x128x128xbf16>,
    } else {
    }
    return
  }
  func.func @transform_0(%arg0: i32, %arg1: i32, %arg2: memref<7x4xi32, #tpu.memory_space<smem>>) -> (i32, i32, i32) {
    %c0 = arith.constant 0 : index
    %0 = arith.index_cast %arg1 : i32 to index
    %1 = memref.load %arg2[%c0, %0] : memref<7x4xi32, #tpu.memory_space<smem>>
    %c3 = arith.constant 3 : index
    %2 = arith.index_cast %arg1 : i32 to index
    %3 = memref.load %arg2[%c3, %2] : memref<7x4xi32, #tpu.memory_space<smem>>
    %c4 = arith.constant 4 : index
    %4 = arith.index_cast %arg1 : i32 to index
    %5 = memref.load %arg2[%c4, %4] : memref<7x4xi32, #tpu.memory_space<smem>>
    %c0_i32 = arith.constant 0 : i32
    return %1, %3, %5 : i32, i32, i32
  }
  func.func @transform_1(%arg0: i32, %arg1: i32, %arg2: memref<7x4xi32, #tpu.memory_space<smem>>) -> (i32, i32, i32) {
    %c1 = arith.constant 1 : index
    %0 = arith.index_cast %arg1 : i32 to index
    %1 = memref.load %arg2[%c1, %0] : memref<7x4xi32, #tpu.memory_space<smem>>
    %c4 = arith.constant 4 : index
    %2 = arith.index_cast %arg1 : i32 to index
    %3 = memref.load %arg2[%c4, %2] : memref<7x4xi32, #tpu.memory_space<smem>>
    %c0_i32 = arith.constant 0 : i32
    %c0_i32_0 = arith.constant 0 : i32
    return %1, %3, %c0_i32 : i32, i32, i32
  }
  func.func @transform_2(%arg0: i32, %arg1: i32, %arg2: memref<7x4xi32, #tpu.memory_space<smem>>) -> (i32, i32, i32) {
    %c0 = arith.constant 0 : index
    %0 = arith.index_cast %arg1 : i32 to index
    %1 = memref.load %arg2[%c0, %0] : memref<7x4xi32, #tpu.memory_space<smem>>
    %c0_i32 = arith.constant 0 : i32
    %c0_i32_0 = arith.constant 0 : i32
    return %1, %c0_i32, %arg0 : i32, i32, i32
  }
  func.func @transform_3(%arg0: i32, %arg1: i32, %arg2: memref<7x4xi32, #tpu.memory_space<smem>>) -> (i32, i32, i32) {
    %c0 = arith.constant 0 : index
    %0 = arith.index_cast %arg1 : i32 to index
    %1 = memref.load %arg2[%c0, %0] : memref<7x4xi32, #tpu.memory_space<smem>>
    %c0_i32 = arith.constant 0 : i32
    %c0_i32_0 = arith.constant 0 : i32
    return %1, %c0_i32, %arg0 : i32, i32, i32
  }
  func.func @transform_4(%arg0: i32, %arg1: i32, %arg2: memref<7x4xi32, #tpu.memory_space<smem>>) -> (i32, i32, i32) {
    %c0 = arith.constant 0 : index
    %0 = arith.index_cast %arg1 : i32 to index
    %1 = memref.load %arg2[%c0, %0] : memref<7x4xi32, #tpu.memory_space<smem>>
    %c3 = arith.constant 3 : index
    %2 = arith.index_cast %arg1 : i32 to index
    %3 = memref.load %arg2[%c3, %2] : memref<7x4xi32, #tpu.memory_space<smem>>
    %c0_i32 = arith.constant 0 : i32
    %c0_i32_0 = arith.constant 0 : i32
    return %1, %3, %c0_i32 : i32, i32, i32
  }
  func.func @transform_5(%arg0: i32, %arg1: i32, %arg2: memref<7x4xi32, #tpu.memory_space<smem>>) -> (i32, i32, i32) {
    %c2 = arith.constant 2 : index
    %0 = arith.index_cast %arg1 : i32 to index
    %1 = memref.load %arg2[%c2, %0] : memref<7x4xi32, #tpu.memory_space<smem>>
    %c3 = arith.constant 3 : index
    %2 = arith.index_cast %arg1 : i32 to index
    %3 = memref.load %arg2[%c3, %2] : memref<7x4xi32, #tpu.memory_space<smem>>
    %c0_i32 = arith.constant 0 : i32
    return %1, %3, %arg0 : i32, i32, i32
  }
}

</mosaic_0001>

<llo_original>
// kernel: tpu_custom_call.1
$region0: #{tpu_custom_call.1}
  #allocation0 [shape = 'u32[]', space=smem, size = 0x4, offset = 0x4, fixed_abs, tag = 'smem constant byte address 0x4 - core index']
  #allocation1 [shape = 'u32[144,128]{1,0:T(1,128)}', space=vmem, size = 0x12000, scoped, tag = 'internal scratch']
  #allocation2 [shape = 'f32[128,128]{1,0:T(8,128)}', space=vmem, size = 0x10000, scoped, tag = 'scratch operand']
  #allocation3 [shape = 's32[1]{0}', space=sflag, size = 0x4, scoped, tag = 'scoped memory for tpu_custom_call.1']
  #allocation4 [shape = 'u8[4096]{0}', space=smem, size = 0x1000, scoped, tag = 'prefetched SMEM operand 0']
  %s0 = inlined_call_operand.vmem [shape: s32[7,4], index: 0, kind: input, shape index: {}]
  %s1 = inlined_call_operand.vmem [shape: bf16[4,128,128], index: 1, kind: input, shape index: {}]
  %s2 = inlined_call_operand.hbm [shape: bf16[3,128,128], index: 2, kind: input, shape index: {}]
  %s3 = inlined_call_operand.vmem [shape: bf16[4,128,128], index: 3, kind: input, shape index: {}]
  %s4 = inlined_call_operand.vmem [shape: f32[4,1,128], index: 4, kind: input, shape index: {}]
  %s5 = inlined_call_operand.vmem [shape: f32[4,128,1], index: 5, kind: input, shape index: {}]
  %s6 = inlined_call_operand.hbm [shape: bf16[3,128,128], index: 6, kind: output, shape index: {}]
  %s7 = sld [smem:[#allocation0]]
  $region69: #{tpu_custom_call.1} parent=0
    _
  %s9 = ssub.s32 1, %s7
  %s10 = scalar_select 0, %s9, %s7
  %s11 = sshll.u32 %s0, 4
  %s12 = int_to_ptr.vmem [resolvable:$true] %s11
  %14 = dma.vmem_to_smem %s12, 128, [#allocation4], [#allocation3]
  %15 = dma.done [#allocation3], 128
  %16 = sfence
  $region1: #{tpu_custom_call.1} parent=0
    #allocation5 [shape = 'u8[65536]{0}', space=vmem, size = 0x10000, scoped, tag = 'input window, operand 2']
    #allocation6 [shape = 's32[2]{0}', space=sflag, size = 0x8, scoped, tag = 'scoped memory for tpu_custom_call.1']
    #allocation7 [shape = 's32[2]{0}', space=sflag, size = 0x8, scoped, tag = 'scoped memory for tpu_custom_call.1']
    #allocation8 [shape = 'u8[65536]{0}', space=vmem, size = 0x10000, scoped, tag = 'output window, operand 0']
    %17 = vsyncpa [#allocation6], 0
    %s18 = scalar_lea.sflag [#allocation6], 1
    %19 = vsyncpa %s18, 0
    %20 = vsyncpa [#allocation7], 0
    %s21 = scalar_lea.sflag [#allocation7], 1
    %22 = vsyncpa %s21, 0
    loop: start=0, step=1, limit=6
    $region2: #{tpu_custom_call.1} parent=1 // loop_pre_header
      _
    $region3: #{tpu_custom_call.1} parent=1 // loop_header
      %s24 = sphi 0, %s28
      %p25 = scmp.ge.s32.totalorder %s24, 6
      %s31 = sphi 0, %s43
      %s32 = sphi 0, %s39
      %s33 = sphi 0, %s31
      %s34 = sphi 0, %s32
      %s35 = sphi 0, %s33
      %s36 = sphi 0, %s34
      %s76 = sphi 0, %s78
      %s79 = sphi 0, %s76
      %s80 = sphi 0, %s79
      %s96 = sphi 0, %s80
      %s128 = sphi 0, %s130
      %s131 = sphi 0, %s128
      %s132 = sphi 0, %s131
      %s148 = sphi 0, %s132
      %s158 = sphi 0, %s160
      %s161 = sphi 0, %s158
      %s162 = sphi 0, %s161
      %s178 = sphi 0, %s162
      %s188 = sphi 0, %s190
      %s191 = sphi 0, %s188
      %s192 = sphi 0, %s191
      %s208 = sphi 0, %s192
      %s234 = sphi 0, %s236
      %s237 = sphi 0, %s234
      %s238 = sphi 0, %s237
      %s254 = sphi 0, %s238
      %s288 = sphi 0, %s290
      %s291 = sphi 0, %s288
      %s292 = sphi 0, %s291
      %s308 = sphi 0, %s292
    $region4: #{tpu_custom_call.1} parent=1 // loop_header_branch
      %27 = sbr.rel (%p25) target = $region8
    $region5: #{tpu_custom_call.1} parent=1 // loop_body
      %s29 = ssub.s32 %s24, 1
      %s30 = ssub.s32 %s24, 2
      %s37 = sadd.s32 1, %s32
      %p38 = scmp.ge.s32.totalorder %s37, 4
      %s39 = scalar_select %p38, 0, %s37
      %s40 = sadd.s32 1, %s31
      %s41 = scalar_select %p38, %s40, %s31
      %p42 = scmp.ge.s32.totalorder %s41, 1
      %s43 = scalar_select %p42, 0, %s41
      %s44 = sld [smem:[#allocation4 + %s32]]
      %s45 = sshra.s32 %s32, 7
      %s46 = sand.u32 %s32, 127
      %s47 = sadd.s32 %s45, 3
      %s48 = smul.u32 %s47, 128
      %s49 = sshra.s32 %s32, 7
      %s50 = sand.u32 %s32, 127
      %s51 = sadd.s32 %s48, %s50
      %s52 = sld [smem:[#allocation4 + %s51]]
      %s53 = sadd.s32 %s45, 4
      %s54 = smul.u32 %s53, 128
      %s55 = sadd.s32 %s54, %s50
      %s56 = sld [smem:[#allocation4 + %s55]]
      %s57 = sld [smem:[#allocation4 + %s39]]
      %s58 = sshra.s32 %s39, 7
      %s59 = sand.u32 %s39, 127
      %s60 = sadd.s32 %s58, 3
      %s61 = smul.u32 %s60, 128
      %s62 = sshra.s32 %s39, 7
      %s63 = sand.u32 %s39, 127
      %s64 = sadd.s32 %s61, %s63
      %s65 = sld [smem:[#allocation4 + %s64]]
      %s66 = sadd.s32 %s58, 4
      %s67 = smul.u32 %s66, 128
      %s68 = sadd.s32 %s67, %s63
      %s69 = sld [smem:[#allocation4 + %s68]]
      %s70 = ssub.s32 %s44, %s57
      %s71 = ssub.s32 %s52, %s65
      %s72 = sor.u32 %s70, %s71
      %s73 = ssub.s32 %s56, %s69
      %s74 = sor.u32 %s72, %s73
      %p75 = scmp.eq.s32.totalorder %s74, 0
      %s77 = sadd.s32 %s76, 1
      %s78 = scalar_select %p75, %s76, %s77
      %p81 = pneg %p75
      %p82 = scmp.eq.s32.totalorder %s24, 3
      %p83 = por %p81, %p82
      %p84 = scmp.ne.s32.totalorder %s76, %s79
      %p85 = scmp.eq.s32.totalorder %s24, 0
      %p86 = por %p84, %p85
      %p87 = scmp.ne.s32.totalorder %s76, %s79
      %p88 = scmp.eq.s32.totalorder %s29, 3
      %p89 = por %p87, %p88
      %p90 = scmp.ne.s32.totalorder %s79, %s80
      %p91 = scmp.eq.s32.totalorder %s29, 0
      %p92 = por %p90, %p91
      %p93 = scmp.ne.s32.totalorder %s79, %s80
      %p94 = scmp.eq.s32.totalorder %s30, 3
      %p95 = por %p93, %p94
      %p97 = scmp.ne.s32.totalorder %s80, %s96
      %p98 = scmp.eq.s32.totalorder %s30, 0
      %p99 = por %p97, %p98
      %s100 = sshra.s32 %s32, 7
      %s101 = sand.u32 %s32, 127
      %s102 = sadd.s32 %s100, 1
      %s103 = smul.u32 %s102, 128
      %s104 = sshra.s32 %s32, 7
      %s105 = sand.u32 %s32, 127
      %s106 = sadd.s32 %s103, %s105
      %s107 = sld [smem:[#allocation4 + %s106]]
      %s108 = sadd.s32 %s100, 4
      %s109 = smul.u32 %s108, 128
      %s110 = sadd.s32 %s109, %s105
      %s111 = sld [smem:[#allocation4 + %s110]]
      %s112 = sshra.s32 %s39, 7
      %s113 = sand.u32 %s39, 127
      %s114 = sadd.s32 %s112, 1
      %s115 = smul.u32 %s114, 128
      %s116 = sshra.s32 %s39, 7
      %s117 = sand.u32 %s39, 127
      %s118 = sadd.s32 %s115, %s117
      %s119 = sld [smem:[#allocation4 + %s118]]
      %s120 = sadd.s32 %s112, 4
      %s121 = smul.u32 %s120, 128
      %s122 = sadd.s32 %s121, %s117
      %s123 = sld [smem:[#allocation4 + %s122]]
      %s124 = ssub.s32 %s107, %s119
      %s125 = ssub.s32 %s111, %s123
      %s126 = sor.u32 %s124, %s125
      %p127 = scmp.eq.s32.totalorder %s126, 0
      %s129 = sadd.s32 %s128, 1
      %s130 = scalar_select %p127, %s128, %s129
      %p133 = pneg %p127
      %p134 = scmp.eq.s32.totalorder %s24, 3
      %p135 = por %p133, %p134
      %p136 = scmp.ne.s32.totalorder %s128, %s131
      %p137 = scmp.eq.s32.totalorder %s24, 0
      %p138 = por %p136, %p137
      %p139 = scmp.ne.s32.totalorder %s128, %s131
      %p140 = scmp.eq.s32.totalorder %s29, 3
      %p141 = por %p139, %p140
      %p142 = scmp.ne.s32.totalorder %s131, %s132
      %p143 = scmp.eq.s32.totalorder %s29, 0
      %p144 = por %p142, %p143
      %p145 = scmp.ne.s32.totalorder %s131, %s132
      %p146 = scmp.eq.s32.totalorder %s30, 3
      %p147 = por %p145, %p146
      %p149 = scmp.ne.s32.totalorder %s132, %s148
      %p150 = scmp.eq.s32.totalorder %s30, 0
      %p151 = por %p149, %p150
      %s152 = sld [smem:[#allocation4 + %s32]]
      %s153 = sld [smem:[#allocation4 + %s39]]
      %s154 = ssub.s32 %s152, %s153
      %s155 = ssub.s32 %s31, %s43
      %s156 = sor.u32 %s154, %s155
      %p157 = scmp.eq.s32.totalorder %s156, 0
      %s159 = sadd.s32 %s158, 1
      %s160 = scalar_select %p157, %s158, %s159
      %p163 = pneg %p157
      %p164 = scmp.eq.s32.totalorder %s24, 3
      %p165 = por %p163, %p164
      %p166 = scmp.ne.s32.totalorder %s158, %s161
      %p167 = scmp.eq.s32.totalorder %s24, 0
      %p168 = por %p166, %p167
      %p169 = scmp.ne.s32.totalorder %s158, %s161
      %p170 = scmp.eq.s32.totalorder %s29, 3
      %p171 = por %p169, %p170
      %p172 = scmp.ne.s32.totalorder %s161, %s162
      %p173 = scmp.eq.s32.totalorder %s29, 0
      %p174 = por %p172, %p173
      %p175 = scmp.ne.s32.totalorder %s161, %s162
      %p176 = scmp.eq.s32.totalorder %s30, 3
      %p177 = por %p175, %p176
      %p179 = scmp.ne.s32.totalorder %s162, %s178
      %p180 = scmp.eq.s32.totalorder %s30, 0
      %p181 = por %p179, %p180
      %s182 = sld [smem:[#allocation4 + %s32]]
      %s183 = sld [smem:[#allocation4 + %s39]]
      %s184 = ssub.s32 %s182, %s183
      %s185 = ssub.s32 %s31, %s43
      %s186 = sor.u32 %s184, %s185
      %p187 = scmp.eq.s32.totalorder %s186, 0
      %s189 = sadd.s32 %s188, 1
      %s190 = scalar_select %p187, %s188, %s189
      %p193 = pneg %p187
      %p194 = scmp.eq.s32.totalorder %s24, 3
      %p195 = por %p193, %p194
      %p196 = scmp.ne.s32.totalorder %s188, %s191
      %p197 = scmp.eq.s32.totalorder %s24, 0
      %p198 = por %p196, %p197
      %p199 = scmp.ne.s32.totalorder %s188, %s191
      %p200 = scmp.eq.s32.totalorder %s29, 3
      %p201 = por %p199, %p200
      %p202 = scmp.ne.s32.totalorder %s191, %s192
      %p203 = scmp.eq.s32.totalorder %s29, 0
      %p204 = por %p202, %p203
      %p205 = scmp.ne.s32.totalorder %s191, %s192
      %p206 = scmp.eq.s32.totalorder %s30, 3
      %p207 = por %p205, %p206
      %p209 = scmp.ne.s32.totalorder %s192, %s208
      %p210 = scmp.eq.s32.totalorder %s30, 0
      %p211 = por %p209, %p210
      %s212 = sld [smem:[#allocation4 + %s32]]
      %s213 = sshra.s32 %s32, 7
      %s214 = sand.u32 %s32, 127
      %s215 = sadd.s32 %s213, 3
      %s216 = smul.u32 %s215, 128
      %s217 = sshra.s32 %s32, 7
      %s218 = sand.u32 %s32, 127
      %s219 = sadd.s32 %s216, %s218
      %s220 = sld [smem:[#allocation4 + %s219]]
      %s221 = sld [smem:[#allocation4 + %s39]]
      %s222 = sshra.s32 %s39, 7
      %s223 = sand.u32 %s39, 127
      %s224 = sadd.s32 %s222, 3
      %s225 = smul.u32 %s224, 128
      %s226 = sshra.s32 %s39, 7
      %s227 = sand.u32 %s39, 127
      %s228 = sadd.s32 %s225, %s227
      %s229 = sld [smem:[#allocation4 + %s228]]
      %s230 = ssub.s32 %s212, %s221
      %s231 = ssub.s32 %s220, %s229
      %s232 = sor.u32 %s230, %s231
      %p233 = scmp.eq.s32.totalorder %s232, 0
      %s235 = sadd.s32 %s234, 1
      %s236 = scalar_select %p233, %s234, %s235
      %p239 = pneg %p233
      %p240 = scmp.eq.s32.totalorder %s24, 3
      %p241 = por %p239, %p240
      %p242 = scmp.ne.s32.totalorder %s234, %s237
      %p243 = scmp.eq.s32.totalorder %s24, 0
      %p244 = por %p242, %p243
      %p245 = scmp.ne.s32.totalorder %s234, %s237
      %p246 = scmp.eq.s32.totalorder %s29, 3
      %p247 = por %p245, %p246
      %p248 = scmp.ne.s32.totalorder %s237, %s238
      %p249 = scmp.eq.s32.totalorder %s29, 0
      %p250 = por %p248, %p249
      %p251 = scmp.ne.s32.totalorder %s237, %s238
      %p252 = scmp.eq.s32.totalorder %s30, 3
      %p253 = por %p251, %p252
      %p255 = scmp.ne.s32.totalorder %s238, %s254
      %p256 = scmp.eq.s32.totalorder %s30, 0
      %p257 = por %p255, %p256
      %s258 = sshra.s32 %s32, 7
      %s259 = sand.u32 %s32, 127
      %s260 = sadd.s32 %s258, 2
      %s261 = smul.u32 %s260, 128
      %s262 = sshra.s32 %s32, 7
      %s263 = sand.u32 %s32, 127
      %s264 = sadd.s32 %s261, %s263
      %s265 = sld [smem:[#allocation4 + %s264]]
      %s266 = sadd.s32 %s258, 3
      %s267 = smul.u32 %s266, 128
      %s268 = sadd.s32 %s267, %s263
      %s269 = sld [smem:[#allocation4 + %s268]]
      %s270 = sshra.s32 %s39, 7
      %s271 = sand.u32 %s39, 127
      %s272 = sadd.s32 %s270, 2
      %s273 = smul.u32 %s272, 128
      %s274 = sshra.s32 %s39, 7
      %s275 = sand.u32 %s39, 127
      %s276 = sadd.s32 %s273, %s275
      %s277 = sld [smem:[#allocation4 + %s276]]
      %s278 = sadd.s32 %s270, 3
      %s279 = smul.u32 %s278, 128
      %s280 = sadd.s32 %s279, %s275
      %s281 = sld [smem:[#allocation4 + %s280]]
      %s282 = ssub.s32 %s265, %s277
      %s283 = ssub.s32 %s269, %s281
      %s284 = sor.u32 %s282, %s283
      %s285 = ssub.s32 %s31, %s43
      %s286 = sor.u32 %s284, %s285
      %p287 = scmp.eq.s32.totalorder %s286, 0
      %s289 = sadd.s32 %s288, 1
      %s290 = scalar_select %p287, %s288, %s289
      %p293 = pneg %p287
      %p294 = scmp.eq.s32.totalorder %s24, 3
      %p295 = por %p293, %p294
      %p296 = scmp.ne.s32.totalorder %s288, %s291
      %p297 = scmp.eq.s32.totalorder %s24, 0
      %p298 = por %p296, %p297
      %p299 = scmp.ne.s32.totalorder %s288, %s291
      %p300 = scmp.eq.s32.totalorder %s29, 3
      %p301 = por %p299, %p300
      %p302 = scmp.ne.s32.totalorder %s291, %s292
      %p303 = scmp.eq.s32.totalorder %s29, 0
      %p304 = por %p302, %p303
      %p305 = scmp.ne.s32.totalorder %s291, %s292
      %p306 = scmp.eq.s32.totalorder %s30, 3
      %p307 = por %p305, %p306
      %p309 = scmp.ne.s32.totalorder %s292, %s308
      %p310 = scmp.eq.s32.totalorder %s30, 0
      %p311 = por %p309, %p310
      %p312 = scmp.le.s32.totalorder 1, %s24
      %p313 = scmp.lt.s32.totalorder %s24, 5
      %p314 = pnand %p312, %p313
      %p315 = pneg %p314
      // Predicated region
      $region9: #{tpu_custom_call.1} parent=5 // pred_check
        _
      $region10: #{tpu_custom_call.1} parent=5 // pred_check_branch
        %317 = sbr.rel (%p314) target = $region12
      $region11: #{tpu_custom_call.1} parent=5 // pred_region
        %s318 = ssub.s32 %s24, 1
      $region12: #{tpu_custom_call.1} parent=5 // pred_fallthru
        _
      %p319 = scmp.lt.s32.totalorder %s24, 4
      // Predicated region
      $region13: #{tpu_custom_call.1} parent=5 // pred_check
        %p320 = pneg %p319
      $region14: #{tpu_custom_call.1} parent=5 // pred_check_branch
        %322 = sbr.rel (%p320) target = $region16
      $region15: #{tpu_custom_call.1} parent=5 // pred_region
        // Predicated region
        $region17: #{tpu_custom_call.1} parent=15 // pred_check
          %p323 = pneg %p86
        $region18: #{tpu_custom_call.1} parent=15 // pred_check_branch
          %325 = sbr.rel (%p323) target = $region20
        $region19: #{tpu_custom_call.1} parent=15 // pred_region
          %s326 = sld [smem:[#allocation4 + %s32]]
          %s327 = sshra.s32 %s32, 7
          %s328 = sand.u32 %s32, 127
          %s329 = sadd.s32 %s327, 3
          %s330 = smul.u32 %s329, 128
          %s331 = sshra.s32 %s32, 7
          %s332 = sand.u32 %s32, 127
          %s333 = sadd.s32 %s330, %s332
          %s334 = sld [smem:[#allocation4 + %s333]]
          %s335 = sadd.s32 %s327, 4
          %s336 = smul.u32 %s335, 128
          %s337 = sadd.s32 %s336, %s332
          %s338 = sld [smem:[#allocation4 + %s337]]
          %s339 = smul.u32 16, %s334
          %p340 = scmp.lt.s32.totalorder %s326, 3
          %s341 = scalar_select %p340, %s326, 3
          %p342 = scmp.lt.s32.totalorder %s339, 15
          %s343 = scalar_select %p342, %s339, 15
          %p344 = scmp.lt.s32.totalorder %s338, 0
          %s345 = scalar_select %p344, %s338, 0
          %s346 = sadd.s32 %s345, %s343
          %s347 = smul.addr %s341, 16
          %s348 = sadd.s32 %s346, %s347
          %s349 = smul.addr %s348, 4
          %s350 = scalar_lea.vmem %s1, %s349
          %s351 = sld [smem:[#allocation4 + %s32]]
          %s352 = sshra.s32 %s32, 7
          %s353 = sand.u32 %s32, 127
          %s354 = sadd.s32 %s352, 3
          %s355 = smul.u32 %s354, 128
          %s356 = sshra.s32 %s32, 7
          %s357 = sand.u32 %s32, 127
          %s358 = sadd.s32 %s355, %s357
          %s359 = sld [smem:[#allocation4 + %s358]]
          %s360 = sadd.s32 %s352, 4
          %s361 = smul.u32 %s360, 128
          %s362 = sadd.s32 %s361, %s357
          %s363 = sld [smem:[#allocation4 + %s362]]
          %s364 = smul.u32 16, %s359
        $region20: #{tpu_custom_call.1} parent=15 // pred_fallthru
          _
        // Predicated region
        $region21: #{tpu_custom_call.1} parent=15 // pred_check
          %p365 = pneg %p138
        $region22: #{tpu_custom_call.1} parent=15 // pred_check_branch
          %367 = sbr.rel (%p365) target = $region24
        $region23: #{tpu_custom_call.1} parent=15 // pred_region
          %s368 = sand.u32 %s128, 1
          %s369 = scalar_lea.sflag [#allocation6], %s368
          %s370 = sand.u32 %s128, 1
          %s371 = smul.addr %s370, 64
          %s372 = scalar_lea.vmem [#allocation5], %s371
          %s373 = sshra.s32 %s32, 7
          %s374 = sand.u32 %s32, 127
          %s375 = sadd.s32 %s373, 1
          %s376 = smul.u32 %s375, 128
          %s377 = sshra.s32 %s32, 7
          %s378 = sand.u32 %s32, 127
          %s379 = sadd.s32 %s376, %s378
          %s380 = sld [smem:[#allocation4 + %s379]]
          %s381 = sadd.s32 %s373, 4
          %s382 = smul.u32 %s381, 128
          %s383 = sadd.s32 %s382, %s378
          %s384 = sld [smem:[#allocation4 + %s383]]
          %s385 = smul.u32 16, %s384
          %s387 = ssub.s32 1024, 1024
          %388 = vsyncadd %s369, %s387
          %s389 = smul.addr %s380, 16
          %s390 = sadd.s32 %s385, %s389
          %s391 = smul.addr %s390, 64
          %s392 = scalar_lea.hbm %s2, %s391
          %s393 = sshll.u32 %s372, 4
          %s394 = int_to_ptr.vmem [resolvable:$true] %s393
          %399 = dma.hbm_to_vmem [thread:$0]  %s392, 1024, %s394, %s369, 64, 64, 4
        $region24: #{tpu_custom_call.1} parent=15 // pred_fallthru
          _
        // Predicated region
        $region25: #{tpu_custom_call.1} parent=15 // pred_check
          %p400 = pneg %p168
        $region26: #{tpu_custom_call.1} parent=15 // pred_check_branch
          %402 = sbr.rel (%p400) target = $region28
        $region27: #{tpu_custom_call.1} parent=15 // pred_region
          %s403 = sld [smem:[#allocation4 + %s32]]
          %p404 = scmp.lt.s32.totalorder %s403, 3
          %s405 = scalar_select %p404, %s403, 3
          %p406 = scmp.lt.s32.totalorder %s31, 0
          %s407 = scalar_select %p406, %s31, 0
          %s408 = smul.addr %s405, 16
          %s409 = sadd.s32 %s407, %s408
          %s410 = smul.addr %s409, 4
          %s411 = scalar_lea.vmem %s3, %s410
          %s412 = sld [smem:[#allocation4 + %s32]]
        $region28: #{tpu_custom_call.1} parent=15 // pred_fallthru
          _
        // Predicated region
        $region29: #{tpu_custom_call.1} parent=15 // pred_check
          %p413 = pneg %p198
        $region30: #{tpu_custom_call.1} parent=15 // pred_check_branch
          %415 = sbr.rel (%p413) target = $region32
        $region31: #{tpu_custom_call.1} parent=15 // pred_region
          %s416 = sld [smem:[#allocation4 + %s32]]
          %p417 = scmp.lt.s32.totalorder %s416, 3
          %s418 = scalar_select %p417, %s416, 3
          %p419 = scmp.lt.s32.totalorder %s31, 0
          %s420 = scalar_select %p419, %s31, 0
          %s421 = sadd.s32 %s420, %s418
          %s422 = scalar_lea.vmem %s4, %s421
          %s423 = sld [smem:[#allocation4 + %s32]]
        $region32: #{tpu_custom_call.1} parent=15 // pred_fallthru
          _
        // Predicated region
        $region33: #{tpu_custom_call.1} parent=15 // pred_check
          %p424 = pneg %p244
        $region34: #{tpu_custom_call.1} parent=15 // pred_check_branch
          %426 = sbr.rel (%p424) target = $region36
        $region35: #{tpu_custom_call.1} parent=15 // pred_region
          %s427 = sld [smem:[#allocation4 + %s32]]
          %s428 = sshra.s32 %s32, 7
          %s429 = sand.u32 %s32, 127
          %s430 = sadd.s32 %s428, 3
          %s431 = smul.u32 %s430, 128
          %s432 = sshra.s32 %s32, 7
          %s433 = sand.u32 %s32, 127
          %s434 = sadd.s32 %s431, %s433
          %s435 = sld [smem:[#allocation4 + %s434]]
          %s436 = smul.u32 16, %s435
          %p437 = scmp.lt.s32.totalorder %s427, 3
          %s438 = scalar_select %p437, %s427, 3
          %p439 = scmp.lt.s32.totalorder %s436, 15
          %s440 = scalar_select %p439, %s436, 15
          %s441 = smul.addr %s438, 16
          %s442 = sadd.s32 %s440, %s441
          %s443 = smul.addr %s442, 8
          %s444 = scalar_lea.vmem %s5, %s443
          %s445 = sld [smem:[#allocation4 + %s32]]
          %s446 = sshra.s32 %s32, 7
          %s447 = sand.u32 %s32, 127
          %s448 = sadd.s32 %s446, 3
          %s449 = smul.u32 %s448, 128
          %s450 = sshra.s32 %s32, 7
          %s451 = sand.u32 %s32, 127
          %s452 = sadd.s32 %s449, %s451
          %s453 = sld [smem:[#allocation4 + %s452]]
          %s454 = smul.u32 16, %s453
        $region36: #{tpu_custom_call.1} parent=15 // pred_fallthru
          _
      $region16: #{tpu_custom_call.1} parent=5 // pred_fallthru
        _
      %p455 = scmp.le.s32.totalorder 1, %s24
      %p456 = scmp.lt.s32.totalorder %s24, 5
      %p457 = pnand %p455, %p456
      %p458 = pneg %p457
      // Predicated region
      $region37: #{tpu_custom_call.1} parent=5 // pred_check
        _
      $region38: #{tpu_custom_call.1} parent=5 // pred_check_branch
        %460 = sbr.rel (%p457) target = $region40
      $region39: #{tpu_custom_call.1} parent=5 // pred_region
        %s461 = ssub.s32 %s24, 1
        %s462 = sand.u32 %s131, 1
        %s463 = scalar_lea.sflag [#allocation6], %s462
        %s464 = sand.u32 %s131, 1
        %s465 = smul.addr %s464, 64
        %s466 = scalar_lea.vmem [#allocation5], %s465
        // Predicated region
        $region41: #{tpu_custom_call.1} parent=39 // pred_check
          %p467 = pneg %p144
        $region42: #{tpu_custom_call.1} parent=39 // pred_check_branch
          %469 = sbr.rel (%p467) target = $region44
        $region43: #{tpu_custom_call.1} parent=39 // pred_region
          %470 = dma.done %s463, 1024
        $region44: #{tpu_custom_call.1} parent=39 // pred_fallthru
          _
        %s471 = sld [smem:[#allocation4 + %s34]]
        %s472 = sshra.s32 %s34, 7
        %s473 = sand.u32 %s34, 127
        %s474 = sadd.s32 %s472, 3
        %s475 = smul.u32 %s474, 128
        %s476 = sshra.s32 %s34, 7
        %s477 = sand.u32 %s34, 127
        %s478 = sadd.s32 %s475, %s477
        %s479 = sld [smem:[#allocation4 + %s478]]
        %s480 = sadd.s32 %s472, 4
        %s481 = smul.u32 %s480, 128
        %s482 = sadd.s32 %s481, %s477
        %s483 = sld [smem:[#allocation4 + %s482]]
        %s484 = smul.u32 16, %s479
        %p485 = scmp.lt.s32.totalorder %s471, 3
        %s486 = scalar_select %p485, %s471, 3
        %p487 = scmp.lt.s32.totalorder %s484, 15
        %s488 = scalar_select %p487, %s484, 15
        %p489 = scmp.lt.s32.totalorder %s483, 0
        %s490 = scalar_select %p489, %s483, 0
        %s491 = sadd.s32 %s490, %s488
        %s492 = smul.addr %s486, 16
        %s493 = sadd.s32 %s491, %s492
        %s494 = smul.addr %s493, 4
        %s495 = scalar_lea.vmem %s1, %s494
        %p496 = pneg %p92
        %p497 = pneg %p89
        %s498 = sand.u32 %s131, 1
        %s499 = scalar_lea.sflag [#allocation6], %s498
        %s500 = sand.u32 %s131, 1
        %s501 = smul.addr %s500, 64
        %s502 = scalar_lea.vmem [#allocation5], %s501
        %p503 = pneg %p144
        %p504 = pneg %p141
        %s505 = sld [smem:[#allocation4 + %s34]]
        %p506 = scmp.lt.s32.totalorder %s505, 3
        %s507 = scalar_select %p506, %s505, 3
        %p508 = scmp.lt.s32.totalorder %s33, 0
        %s509 = scalar_select %p508, %s33, 0
        %s510 = smul.addr %s507, 16
        %s511 = sadd.s32 %s509, %s510
        %s512 = smul.addr %s511, 4
        %s513 = scalar_lea.vmem %s3, %s512
        %p514 = pneg %p174
        %p515 = pneg %p171
        %s516 = sld [smem:[#allocation4 + %s34]]
        %p517 = scmp.lt.s32.totalorder %s516, 3
        %s518 = scalar_select %p517, %s516, 3
        %p519 = scmp.lt.s32.totalorder %s33, 0
        %s520 = scalar_select %p519, %s33, 0
        %s521 = sadd.s32 %s520, %s518
        %s522 = scalar_lea.vmem %s4, %s521
        %p523 = pneg %p204
        %p524 = pneg %p201
        %s525 = sld [smem:[#allocation4 + %s34]]
        %s526 = sshra.s32 %s34, 7
        %s527 = sand.u32 %s34, 127
        %s528 = sadd.s32 %s526, 3
        %s529 = smul.u32 %s528, 128
        %s530 = sshra.s32 %s34, 7
        %s531 = sand.u32 %s34, 127
        %s532 = sadd.s32 %s529, %s531
        %s533 = sld [smem:[#allocation4 + %s532]]
        %s534 = smul.u32 16, %s533
        %p535 = scmp.lt.s32.totalorder %s525, 3
        %s536 = scalar_select %p535, %s525, 3
        %p537 = scmp.lt.s32.totalorder %s534, 15
        %s538 = scalar_select %p537, %s534, 15
        %s539 = smul.addr %s536, 16
        %s540 = sadd.s32 %s538, %s539
        %s541 = smul.addr %s540, 8
        %s542 = scalar_lea.vmem %s5, %s541
        %p543 = pneg %p250
        %p544 = pneg %p247
        %p545 = pneg %p304
        %p546 = pneg %p301
        %s547 = sand.u32 %s291, 1
        %s548 = scalar_lea.sflag [#allocation7], %s547
        %s549 = sand.u32 %s291, 1
        %s550 = smul.addr %s549, 64
        %s551 = scalar_lea.vmem [#allocation8], %s550
        %s552 = sld [smem:[#allocation4 + %s34]]
        %s553 = sshra.s32 %s34, 7
        %s554 = sand.u32 %s34, 127
        %s555 = sadd.s32 %s553, 3
        %s556 = smul.u32 %s555, 128
        %s557 = sshra.s32 %s34, 7
        %s558 = sand.u32 %s34, 127
        %s559 = sadd.s32 %s556, %s558
        %s560 = sld [smem:[#allocation4 + %s559]]
        %s561 = sadd.s32 %s553, 4
        %s562 = smul.u32 %s561, 128
        %s563 = sadd.s32 %s562, %s558
        %s564 = sld [smem:[#allocation4 + %s563]]
        %s565 = smul.u32 16, %s560
        %p566 = scmp.lt.s32.totalorder %s552, 3
        %s567 = scalar_select %p566, %s552, 3
        %p568 = scmp.lt.s32.totalorder %s565, 15
        %s569 = scalar_select %p568, %s565, 15
        %p570 = scmp.lt.s32.totalorder %s564, 0
        %s571 = scalar_select %p570, %s564, 0
        %s572 = sadd.s32 %s571, %s569
        %s573 = smul.addr %s567, 16
        %s574 = sadd.s32 %s572, %s573
        %s575 = smul.addr %s574, 4
        %s576 = scalar_lea.vmem %s1, %s575
        %s577 = sld [smem:[#allocation4 + %s34]]
        %s578 = sshra.s32 %s34, 7
        %s579 = sand.u32 %s34, 127
        %s580 = sadd.s32 %s578, 3
        %s581 = smul.u32 %s580, 128
        %s582 = sshra.s32 %s34, 7
        %s583 = sand.u32 %s34, 127
        %s584 = sadd.s32 %s581, %s583
        %s585 = sld [smem:[#allocation4 + %s584]]
        %s586 = sadd.s32 %s578, 4
        %s587 = smul.u32 %s586, 128
        %s588 = sadd.s32 %s587, %s583
        %s589 = sld [smem:[#allocation4 + %s588]]
        %s590 = smul.u32 16, %s585
        %s591 = sshra.s32 %s34, 7
        %s592 = sand.u32 %s34, 127
        %s593 = sadd.s32 %s591, 1
        %s594 = smul.u32 %s593, 128
        %s595 = sshra.s32 %s34, 7
        %s596 = sand.u32 %s34, 127
        %s597 = sadd.s32 %s594, %s596
        %s598 = sld [smem:[#allocation4 + %s597]]
        %s599 = sadd.s32 %s591, 4
        %s600 = smul.u32 %s599, 128
        %s601 = sadd.s32 %s600, %s596
        %s602 = sld [smem:[#allocation4 + %s601]]
        %s603 = smul.u32 16, %s602
        %s604 = sld [smem:[#allocation4 + %s34]]
        %p605 = scmp.lt.s32.totalorder %s604, 3
        %s606 = scalar_select %p605, %s604, 3
        %p607 = scmp.lt.s32.totalorder %s33, 0
        %s608 = scalar_select %p607, %s33, 0
        %s609 = smul.addr %s606, 16
        %s610 = sadd.s32 %s608, %s609
        %s611 = smul.addr %s610, 4
        %s612 = scalar_lea.vmem %s3, %s611
        %s613 = sld [smem:[#allocation4 + %s34]]
        %s614 = sld [smem:[#allocation4 + %s34]]
        %p615 = scmp.lt.s32.totalorder %s614, 3
        %s616 = scalar_select %p615, %s614, 3
        %p617 = scmp.lt.s32.totalorder %s33, 0
        %s618 = scalar_select %p617, %s33, 0
        %s619 = sadd.s32 %s618, %s616
        %s620 = scalar_lea.vmem %s4, %s619
        %s621 = sld [smem:[#allocation4 + %s34]]
        %s622 = sld [smem:[#allocation4 + %s34]]
        %s623 = sshra.s32 %s34, 7
        %s624 = sand.u32 %s34, 127
        %s625 = sadd.s32 %s623, 3
        %s626 = smul.u32 %s625, 128
        %s627 = sshra.s32 %s34, 7
        %s628 = sand.u32 %s34, 127
        %s629 = sadd.s32 %s626, %s628
        %s630 = sld [smem:[#allocation4 + %s629]]
        %s631 = smul.u32 16, %s630
        %p632 = scmp.lt.s32.totalorder %s622, 3
        %s633 = scalar_select %p632, %s622, 3
        %p634 = scmp.lt.s32.totalorder %s631, 15
        %s635 = scalar_select %p634, %s631, 15
        %s636 = smul.addr %s633, 16
        %s637 = sadd.s32 %s635, %s636
        %s638 = smul.addr %s637, 8
        %s639 = scalar_lea.vmem %s5, %s638
        %s640 = sld [smem:[#allocation4 + %s34]]
        %s641 = sshra.s32 %s34, 7
        %s642 = sand.u32 %s34, 127
        %s643 = sadd.s32 %s641, 3
        %s644 = smul.u32 %s643, 128
        %s645 = sshra.s32 %s34, 7
        %s646 = sand.u32 %s34, 127
        %s647 = sadd.s32 %s644, %s646
        %s648 = sld [smem:[#allocation4 + %s647]]
        %s649 = smul.u32 16, %s648
        %s650 = sshra.s32 %s34, 7
        %s651 = sand.u32 %s34, 127
        %s652 = sadd.s32 %s650, 2
        %s653 = smul.u32 %s652, 128
        %s654 = sshra.s32 %s34, 7
        %s655 = sand.u32 %s34, 127
        %s656 = sadd.s32 %s653, %s655
        %s657 = sld [smem:[#allocation4 + %s656]]
        %s658 = sadd.s32 %s650, 3
        %s659 = smul.u32 %s658, 128
        %s660 = sadd.s32 %s659, %s655
        %s661 = sld [smem:[#allocation4 + %s660]]
        %s662 = smul.u32 16, %s661
        %s664 = sshra.s32 %s34, 7
        %s665 = sand.u32 %s34, 127
        %s666 = sadd.s32 %s664, 5
        %s667 = smul.u32 %s666, 128
        %s668 = sshra.s32 %s34, 7
        %s669 = sand.u32 %s34, 127
        %s670 = sadd.s32 %s667, %s669
        %s671 = sld [smem:[#allocation4 + %s670]]
        %p672 = scmp.eq.s32.totalorder %s671, 1
        %s673 = sadd.s32 %s664, 6
        %s674 = smul.u32 %s673, 128
        %s675 = sadd.s32 %s674, %s669
        %s676 = sld [smem:[#allocation4 + %s675]]
        %p677 = scmp.eq.s32.totalorder %s676, 1
        %v678 = vld [vmem:[%s466] sm:$0xf]
        %v679 = vld [vmem:[%s466 + $0x4] sm:$0xf]
        %v680 = vld [vmem:[%s466 + $0x8] sm:$0xf]
        %v681 = vld [vmem:[%s466 + $0xc] sm:$0xf]
        %v682 = vld [vmem:[%s466 + $0x10] sm:$0xf]
        %v683 = vld [vmem:[%s466 + $0x14] sm:$0xf]
        %v684 = vld [vmem:[%s466 + $0x18] sm:$0xf]
        %v685 = vld [vmem:[%s466 + $0x1c] sm:$0xf]
        %v686 = vld [vmem:[%s466 + $0x20] sm:$0xf]
        %v687 = vld [vmem:[%s466 + $0x24] sm:$0xf]
        %v688 = vld [vmem:[%s466 + $0x28] sm:$0xf]
        %v689 = vld [vmem:[%s466 + $0x2c] sm:$0xf]
        %v690 = vld [vmem:[%s466 + $0x30] sm:$0xf]
        %v691 = vld [vmem:[%s466 + $0x34] sm:$0xf]
        %v692 = vld [vmem:[%s466 + $0x38] sm:$0xf]
        %v693 = vld [vmem:[%s466 + $0x3c] sm:$0xf]
        %v694 = vld [vmem:[%s612] sm:$0xf]
        %v695 = vld [vmem:[%s612 + $0x4] sm:$0xf]
        %v696 = vld [vmem:[%s612 + $0x8] sm:$0xf]
        %v697 = vld [vmem:[%s612 + $0xc] sm:$0xf]
        %v698 = vld [vmem:[%s612 + $0x10] sm:$0xf]
        %v699 = vld [vmem:[%s612 + $0x14] sm:$0xf]
        %v700 = vld [vmem:[%s612 + $0x18] sm:$0xf]
        %v701 = vld [vmem:[%s612 + $0x1c] sm:$0xf]
        %v702 = vld [vmem:[%s612 + $0x20] sm:$0xf]
        %v703 = vld [vmem:[%s612 + $0x24] sm:$0xf]
        %v704 = vld [vmem:[%s612 + $0x28] sm:$0xf]
        %v705 = vld [vmem:[%s612 + $0x2c] sm:$0xf]
        %v706 = vld [vmem:[%s612 + $0x30] sm:$0xf]
        %v707 = vld [vmem:[%s612 + $0x34] sm:$0xf]
        %v708 = vld [vmem:[%s612 + $0x38] sm:$0xf]
        %v709 = vld [vmem:[%s612 + $0x3c] sm:$0xf]
        %v710 = vld [vmem:[%s620] sm:$0x1]
        %v712 = vlaneseq
        %v713 = vshrl.u32 %v712, 7
        %v714 = vsub.s32 0, %v713
        %v715 = vrot.slane %v710, %v714
        %v733 = vunpack.c.l.b16 %v678
        %v734 = vunpack.c.l.b16 %v679
        %v735 = vunpack.c.l.b16 %v680
        %v736 = vunpack.c.l.b16 %v681
        %v737 = vunpack.c.l.b16 %v682
        %v738 = vunpack.c.l.b16 %v683
        %v739 = vunpack.c.l.b16 %v684
        %v740 = vunpack.c.l.b16 %v685
        %v741 = vunpack.c.l.b16 %v686
        %v742 = vunpack.c.l.b16 %v687
        %v743 = vunpack.c.l.b16 %v688
        %v744 = vunpack.c.l.b16 %v689
        %v745 = vunpack.c.l.b16 %v690
        %v746 = vunpack.c.l.b16 %v691
        %v747 = vunpack.c.l.b16 %v692
        %v748 = vunpack.c.l.b16 %v693
        %v749 = vpack.c.b16 %v734, %v733
        %v750 = vpack.c.b16 %v736, %v735
        %v751 = vpack.c.b16 %v738, %v737
        %v752 = vpack.c.b16 %v740, %v739
        %v753 = vpack.c.b16 %v742, %v741
        %v754 = vpack.c.b16 %v744, %v743
        %v755 = vpack.c.b16 %v746, %v745
        %v756 = vpack.c.b16 %v748, %v747
        %v781 = vunpack.c.l.b16 %v694
        %v782 = vunpack.c.l.b16 %v695
        %v783 = vunpack.c.l.b16 %v696
        %v784 = vunpack.c.l.b16 %v697
        %v785 = vunpack.c.l.b16 %v698
        %v786 = vunpack.c.l.b16 %v699
        %v787 = vunpack.c.l.b16 %v700
        %v788 = vunpack.c.l.b16 %v701
        %v789 = vunpack.c.l.b16 %v702
        %v790 = vunpack.c.l.b16 %v703
        %v791 = vunpack.c.l.b16 %v704
        %v792 = vunpack.c.l.b16 %v705
        %v793 = vunpack.c.l.b16 %v706
        %v794 = vunpack.c.l.b16 %v707
        %v795 = vunpack.c.l.b16 %v708
        %v796 = vunpack.c.l.b16 %v709
        %v797 = vpack.c.b16 %v782, %v781
        %v798 = vpack.c.b16 %v784, %v783
        %v799 = vpack.c.b16 %v786, %v785
        %v800 = vpack.c.b16 %v788, %v787
        %v801 = vpack.c.b16 %v790, %v789
        %v802 = vpack.c.b16 %v792, %v791
        %v803 = vpack.c.b16 %v794, %v793
        %v804 = vpack.c.b16 %v796, %v795
        %813 = vmatprep.subr.bf16.mxu0 0
        %814 = vmatpush1.bf16.msra.mxu0 %v804
        %815 = vmatprep.subr.bf16.mxu0 0
        %816 = vmatpush1.bf16.msra.mxu0 %v803
        %817 = vmatprep.subr.bf16.mxu0 0
        %818 = vmatpush1.bf16.msra.mxu0 %v802
        %819 = vmatprep.subr.bf16.mxu0 0
        %820 = vmatpush1.bf16.msra.mxu0 %v801
        %821 = vmatprep.subr.bf16.mxu0 0
        %822 = vmatpush1.bf16.msra.mxu0 %v800
        %823 = vmatprep.subr.bf16.mxu0 0
        %824 = vmatpush1.bf16.msra.mxu0 %v799
        %825 = vmatprep.subr.bf16.mxu0 0
        %826 = vmatpush1.bf16.msra.mxu0 %v798
        %827 = vmatprep.subr.bf16.mxu0 0
        %828 = vmatpush1.bf16.msra.mxu0 %v797
        %829 = vmatprep.subr.bf16.mxu0 0
        %830 = vmatpush2.bf16.msra.mxu0 0
        %831 = vmatprep.subr.bf16.mxu0 0
        %832 = vmatpush2.bf16.msra.mxu0 0
        %833 = vmatprep.subr.bf16.mxu0 0
        %834 = vmatpush2.bf16.msra.mxu0 0
        %835 = vmatprep.subr.bf16.mxu0 0
        %836 = vmatpush2.bf16.msra.mxu0 0
        %837 = vmatprep.subr.bf16.mxu0 0
        %838 = vmatpush2.bf16.msra.mxu0 0
        %839 = vmatprep.subr.bf16.mxu0 0
        %840 = vmatpush2.bf16.msra.mxu0 0
        %841 = vmatprep.subr.bf16.mxu0 0
        %842 = vmatpush2.bf16.msra.mxu0 0
        %843 = vmatprep.subr.bf16.mxu0 0
        %844 = vmatpush2.bf16.msra.mxu0 0
        %845 = vmatprep.mubr.bf16.mxu0 0
        %846 = vmatmul.mubr.bf16.gmra.mxu0 %v749
        %v847 = vpop.f32.mrf.mxu0
        %v848 = vadd.f32 %v715, %v847
        %v849 = vpop.f32.mrf.mxu0
        %v850 = vpop.f32.mrf.mxu0
        %v851 = vadd.f32 %v715, %v850
        %v852 = vpop.f32.mrf.mxu0
        %853 = vmatprep.mubr.bf16.mxu0 0
        %854 = vmatmul.mubr.bf16.gmra.mxu0 %v750
        %v855 = vpop.f32.mrf.mxu0
        %v856 = vadd.f32 %v715, %v855
        %v857 = vpop.f32.mrf.mxu0
        %v858 = vpop.f32.mrf.mxu0
        %v859 = vadd.f32 %v715, %v858
        %v860 = vpop.f32.mrf.mxu0
        %861 = vmatprep.mubr.bf16.mxu0 0
        %862 = vmatmul.mubr.bf16.gmra.mxu0 %v751
        %v863 = vpop.f32.mrf.mxu0
        %v864 = vadd.f32 %v715, %v863
        %v865 = vpop.f32.mrf.mxu0
        %v866 = vpop.f32.mrf.mxu0
        %v867 = vadd.f32 %v715, %v866
        %v868 = vpop.f32.mrf.mxu0
        %869 = vmatprep.mubr.bf16.mxu0 0
        %870 = vmatmul.mubr.bf16.gmra.mxu0 %v752
        %v871 = vpop.f32.mrf.mxu0
        %v872 = vadd.f32 %v715, %v871
        %v873 = vpop.f32.mrf.mxu0
        %v874 = vpop.f32.mrf.mxu0
        %v875 = vadd.f32 %v715, %v874
        %v876 = vpop.f32.mrf.mxu0
        %877 = vmatprep.mubr.bf16.mxu0 0
        %878 = vmatmul.mubr.bf16.gmra.mxu0 %v753
        %v879 = vpop.f32.mrf.mxu0
        %v880 = vadd.f32 %v715, %v879
        %v881 = vpop.f32.mrf.mxu0
        %v882 = vpop.f32.mrf.mxu0
        %v883 = vadd.f32 %v715, %v882
        %v884 = vpop.f32.mrf.mxu0
        %885 = vmatprep.mubr.bf16.mxu0 0
        %886 = vmatmul.mubr.bf16.gmra.mxu0 %v754
        %v887 = vpop.f32.mrf.mxu0
        %v888 = vadd.f32 %v715, %v887
        %v889 = vpop.f32.mrf.mxu0
        %v890 = vpop.f32.mrf.mxu0
        %v891 = vadd.f32 %v715, %v890
        %v892 = vpop.f32.mrf.mxu0
        %893 = vmatprep.mubr.bf16.mxu0 0
        %894 = vmatmul.mubr.bf16.gmra.mxu0 %v755
        %v895 = vpop.f32.mrf.mxu0
        %v896 = vadd.f32 %v715, %v895
        %v897 = vpop.f32.mrf.mxu0
        %v898 = vpop.f32.mrf.mxu0
        %v899 = vadd.f32 %v715, %v898
        %v900 = vpop.f32.mrf.mxu0
        %901 = vmatprep.mubr.bf16.mxu0 0
        %902 = vmatmul.mubr.bf16.gmra.mxu0 %v756
        %v903 = vpop.f32.mrf.mxu0
        %v904 = vadd.f32 %v715, %v903
        %v905 = vpop.f32.mrf.mxu0
        %v906 = vpop.f32.mrf.mxu0
        %v907 = vadd.f32 %v715, %v906
        %v908 = vpop.f32.mrf.mxu0
        %909 = vdwg.mxu0
        %v910 = vld [vmem:[%s576] sm:$0xf]
        %v911 = vld [vmem:[%s576 + $0x4] sm:$0xf]
        %v912 = vld [vmem:[%s576 + $0x8] sm:$0xf]
        %v913 = vld [vmem:[%s576 + $0xc] sm:$0xf]
        %v914 = vld [vmem:[%s576 + $0x10] sm:$0xf]
        %v915 = vld [vmem:[%s576 + $0x14] sm:$0xf]
        %v916 = vld [vmem:[%s576 + $0x18] sm:$0xf]
        %v917 = vld [vmem:[%s576 + $0x1c] sm:$0xf]
        %v918 = vld [vmem:[%s576 + $0x20] sm:$0xf]
        %v919 = vld [vmem:[%s576 + $0x24] sm:$0xf]
        %v920 = vld [vmem:[%s576 + $0x28] sm:$0xf]
        %v921 = vld [vmem:[%s576 + $0x2c] sm:$0xf]
        %v922 = vld [vmem:[%s576 + $0x30] sm:$0xf]
        %v923 = vld [vmem:[%s576 + $0x34] sm:$0xf]
        %v924 = vld [vmem:[%s576 + $0x38] sm:$0xf]
        %v925 = vld [vmem:[%s576 + $0x3c] sm:$0xf]
        %v926 = vpack.c.bf16 %v851, %v848
        %v927 = vpack.c.bf16 %v859, %v856
        %v928 = vpack.c.bf16 %v867, %v864
        %v929 = vpack.c.bf16 %v875, %v872
        %v930 = vpack.c.bf16 %v883, %v880
        %v931 = vpack.c.bf16 %v891, %v888
        %v932 = vpack.c.bf16 %v899, %v896
        %v933 = vpack.c.bf16 %v907, %v904
        %v950 = vunpack.c.l.b16 %v910
        %v951 = vunpack.c.l.b16 %v911
        %v952 = vunpack.c.l.b16 %v912
        %v953 = vunpack.c.l.b16 %v913
        %v954 = vunpack.c.l.b16 %v914
        %v955 = vunpack.c.l.b16 %v915
        %v956 = vunpack.c.l.b16 %v916
        %v957 = vunpack.c.l.b16 %v917
        %v958 = vunpack.c.l.b16 %v918
        %v959 = vunpack.c.l.b16 %v919
        %v960 = vunpack.c.l.b16 %v920
        %v961 = vunpack.c.l.b16 %v921
        %v962 = vunpack.c.l.b16 %v922
        %v963 = vunpack.c.l.b16 %v923
        %v964 = vunpack.c.l.b16 %v924
        %v965 = vunpack.c.l.b16 %v925
        %v966 = vpack.c.b16 %v951, %v950
        %v967 = vpack.c.b16 %v953, %v952
        %v968 = vpack.c.b16 %v955, %v954
        %v969 = vpack.c.b16 %v957, %v956
        %v970 = vpack.c.b16 %v959, %v958
        %v971 = vpack.c.b16 %v961, %v960
        %v972 = vpack.c.b16 %v963, %v962
        %v973 = vpack.c.b16 %v965, %v964
        %982 = vmatprep.subr.bf16.mxu0 0
        %983 = vmatpush1.bf16.msra.mxu0 %v933
        %984 = vmatprep.subr.bf16.mxu0 0
        %985 = vmatpush1.bf16.msra.mxu0 %v932
        %986 = vmatprep.subr.bf16.mxu0 0
        %987 = vmatpush1.bf16.msra.mxu0 %v931
        %988 = vmatprep.subr.bf16.mxu0 0
        %989 = vmatpush1.bf16.msra.mxu0 %v930
        %990 = vmatprep.subr.bf16.mxu0 0
        %991 = vmatpush1.bf16.msra.mxu0 %v929
        %992 = vmatprep.subr.bf16.mxu0 0
        %993 = vmatpush1.bf16.msra.mxu0 %v928
        %994 = vmatprep.subr.bf16.mxu0 0
        %995 = vmatpush1.bf16.msra.mxu0 %v927
        %996 = vmatprep.subr.bf16.mxu0 0
        %997 = vmatpush1.bf16.msra.mxu0 %v926
        %998 = vmatprep.subr.bf16.mxu0 0
        %999 = vmatpush2.bf16.msra.mxu0 0
        %1000 = vmatprep.subr.bf16.mxu0 0
        %1001 = vmatpush2.bf16.msra.mxu0 0
        %1002 = vmatprep.subr.bf16.mxu0 0
        %1003 = vmatpush2.bf16.msra.mxu0 0
        %1004 = vmatprep.subr.bf16.mxu0 0
        %1005 = vmatpush2.bf16.msra.mxu0 0
        %1006 = vmatprep.subr.bf16.mxu0 0
        %1007 = vmatpush2.bf16.msra.mxu0 0
        %1008 = vmatprep.subr.bf16.mxu0 0
        %1009 = vmatpush2.bf16.msra.mxu0 0
        %1010 = vmatprep.subr.bf16.mxu0 0
        %1011 = vmatpush2.bf16.msra.mxu0 0
        %1012 = vmatprep.subr.bf16.mxu0 0
        %1013 = vmatpush2.bf16.msra.mxu0 0
        %1014 = vmatprep.mubr.bf16.mxu0 0
        %1015 = vmatmul.mubr.bf16.gmra.mxu0 %v966
        %v1016 = vpop.f32.mrf.mxu0
        %v1017 = vadd.f32 0.0, %v1016
        %v1018 = vpop.f32.mrf.mxu0
        %v1019 = vpop.f32.mrf.mxu0
        %v1020 = vadd.f32 0.0, %v1019
        %v1021 = vpop.f32.mrf.mxu0
        %1022 = vmatprep.mubr.bf16.mxu0 0
        %1023 = vmatmul.mubr.bf16.gmra.mxu0 %v967
        %v1024 = vpop.f32.mrf.mxu0
        %v1025 = vadd.f32 0.0, %v1024
        %v1026 = vpop.f32.mrf.mxu0
        %v1027 = vpop.f32.mrf.mxu0
        %v1028 = vadd.f32 0.0, %v1027
        %v1029 = vpop.f32.mrf.mxu0
        %1030 = vmatprep.mubr.bf16.mxu0 0
        %1031 = vmatmul.mubr.bf16.gmra.mxu0 %v968
        %v1032 = vpop.f32.mrf.mxu0
        %v1033 = vadd.f32 0.0, %v1032
        %v1034 = vpop.f32.mrf.mxu0
        %v1035 = vpop.f32.mrf.mxu0
        %v1036 = vadd.f32 0.0, %v1035
        %v1037 = vpop.f32.mrf.mxu0
        %1038 = vmatprep.mubr.bf16.mxu0 0
        %1039 = vmatmul.mubr.bf16.gmra.mxu0 %v969
        %v1040 = vpop.f32.mrf.mxu0
        %v1041 = vadd.f32 0.0, %v1040
        %v1042 = vpop.f32.mrf.mxu0
        %v1043 = vpop.f32.mrf.mxu0
        %v1044 = vadd.f32 0.0, %v1043
        %v1045 = vpop.f32.mrf.mxu0
        %1046 = vmatprep.mubr.bf16.mxu0 0
        %1047 = vmatmul.mubr.bf16.gmra.mxu0 %v970
        %v1048 = vpop.f32.mrf.mxu0
        %v1049 = vadd.f32 0.0, %v1048
        %v1050 = vpop.f32.mrf.mxu0
        %v1051 = vpop.f32.mrf.mxu0
        %v1052 = vadd.f32 0.0, %v1051
        %v1053 = vpop.f32.mrf.mxu0
        %1054 = vmatprep.mubr.bf16.mxu0 0
        %1055 = vmatmul.mubr.bf16.gmra.mxu0 %v971
        %v1056 = vpop.f32.mrf.mxu0
        %v1057 = vadd.f32 0.0, %v1056
        %v1058 = vpop.f32.mrf.mxu0
        %v1059 = vpop.f32.mrf.mxu0
        %v1060 = vadd.f32 0.0, %v1059
        %v1061 = vpop.f32.mrf.mxu0
        %1062 = vmatprep.mubr.bf16.mxu0 0
        %1063 = vmatmul.mubr.bf16.gmra.mxu0 %v972
        %v1064 = vpop.f32.mrf.mxu0
        %v1065 = vadd.f32 0.0, %v1064
        %v1066 = vpop.f32.mrf.mxu0
        %v1067 = vpop.f32.mrf.mxu0
        %v1068 = vadd.f32 0.0, %v1067
        %v1069 = vpop.f32.mrf.mxu0
        %1070 = vmatprep.mubr.bf16.mxu0 0
        %1071 = vmatmul.mubr.bf16.gmra.mxu0 %v973
        %v1072 = vpop.f32.mrf.mxu0
        %v1073 = vadd.f32 0.0, %v1072
        %v1074 = vpop.f32.mrf.mxu0
        %v1075 = vpop.f32.mrf.mxu0
        %v1076 = vadd.f32 0.0, %v1075
        %v1077 = vpop.f32.mrf.mxu0
        %1078 = vdwg.mxu0
        %v1079 = vld [vmem:[%s639] sm:$0xff]
        %v1080 = vld [vmem:[%s639 + $0x8] sm:$0xff]
        %v1081 = vld [vmem:[%s639 + $0x10] sm:$0xff]
        %v1082 = vld [vmem:[%s639 + $0x18] sm:$0xff]
        %v1083 = vld [vmem:[%s639 + $0x20] sm:$0xff]
        %v1084 = vld [vmem:[%s639 + $0x28] sm:$0xff]
        %v1085 = vld [vmem:[%s639 + $0x30] sm:$0xff]
        %v1086 = vld [vmem:[%s639 + $0x38] sm:$0xff]
        %v1087 = vld [vmem:[%s639 + $0x40] sm:$0xff]
        %v1088 = vld [vmem:[%s639 + $0x48] sm:$0xff]
        %v1089 = vld [vmem:[%s639 + $0x50] sm:$0xff]
        %v1090 = vld [vmem:[%s639 + $0x58] sm:$0xff]
        %v1091 = vld [vmem:[%s639 + $0x60] sm:$0xff]
        %v1092 = vld [vmem:[%s639 + $0x68] sm:$0xff]
        %v1093 = vld [vmem:[%s639 + $0x70] sm:$0xff]
        %v1094 = vld [vmem:[%s639 + $0x78] sm:$0xff]
        %1096 = vset.pattern.permute.xlu0 0
        %1097 = vperm.xlu0 %1096, %v1079
        %v1098 = vpop.permute.xlu0 %1097
        %1101 = vset.pattern.permute.xlu0 0
        %1102 = vperm.xlu0 %1101, %v1080
        %v1103 = vpop.permute.xlu0 %1102
        %1106 = vset.pattern.permute.xlu0 0
        %1107 = vperm.xlu0 %1106, %v1081
        %v1108 = vpop.permute.xlu0 %1107
        %1111 = vset.pattern.permute.xlu0 0
        %1112 = vperm.xlu0 %1111, %v1082
        %v1113 = vpop.permute.xlu0 %1112
        %1116 = vset.pattern.permute.xlu0 0
        %1117 = vperm.xlu0 %1116, %v1083
        %v1118 = vpop.permute.xlu0 %1117
        %1121 = vset.pattern.permute.xlu0 0
        %1122 = vperm.xlu0 %1121, %v1084
        %v1123 = vpop.permute.xlu0 %1122
        %1126 = vset.pattern.permute.xlu0 0
        %1127 = vperm.xlu0 %1126, %v1085
        %v1128 = vpop.permute.xlu0 %1127
        %1131 = vset.pattern.permute.xlu0 0
        %1132 = vperm.xlu0 %1131, %v1086
        %v1133 = vpop.permute.xlu0 %1132
        %1136 = vset.pattern.permute.xlu0 0
        %1137 = vperm.xlu0 %1136, %v1087
        %v1138 = vpop.permute.xlu0 %1137
        %1141 = vset.pattern.permute.xlu0 0
        %1142 = vperm.xlu0 %1141, %v1088
        %v1143 = vpop.permute.xlu0 %1142
        %1146 = vset.pattern.permute.xlu0 0
        %1147 = vperm.xlu0 %1146, %v1089
        %v1148 = vpop.permute.xlu0 %1147
        %1151 = vset.pattern.permute.xlu0 0
        %1152 = vperm.xlu0 %1151, %v1090
        %v1153 = vpop.permute.xlu0 %1152
        %1156 = vset.pattern.permute.xlu0 0
        %1157 = vperm.xlu0 %1156, %v1091
        %v1158 = vpop.permute.xlu0 %1157
        %1161 = vset.pattern.permute.xlu0 0
        %1162 = vperm.xlu0 %1161, %v1092
        %v1163 = vpop.permute.xlu0 %1162
        %1166 = vset.pattern.permute.xlu0 0
        %1167 = vperm.xlu0 %1166, %v1093
        %v1168 = vpop.permute.xlu0 %1167
        %1171 = vset.pattern.permute.xlu0 0
        %1172 = vperm.xlu0 %1171, %v1094
        %v1173 = vpop.permute.xlu0 %1172
        %v1175 = vmul.f32 %v1017, %v1098
        %v1176 = vmul.f32 %v1020, %v1103
        %v1177 = vmul.f32 %v1025, %v1108
        %v1178 = vmul.f32 %v1028, %v1113
        %v1179 = vmul.f32 %v1033, %v1118
        %v1180 = vmul.f32 %v1036, %v1123
        %v1181 = vmul.f32 %v1041, %v1128
        %v1182 = vmul.f32 %v1044, %v1133
        %v1183 = vmul.f32 %v1049, %v1138
        %v1184 = vmul.f32 %v1052, %v1143
        %v1185 = vmul.f32 %v1057, %v1148
        %v1186 = vmul.f32 %v1060, %v1153
        %v1187 = vmul.f32 %v1065, %v1158
        %v1188 = vmul.f32 %v1068, %v1163
        %v1189 = vmul.f32 %v1073, %v1168
        %v1190 = vmul.f32 %v1076, %v1173
        // Predicated region
        $region45: #{tpu_custom_call.1} parent=39 // pred_check
          %p1191 = pneg %p672
        $region46: #{tpu_custom_call.1} parent=39 // pred_check_branch
          %1193 = sbr.rel (%p1191) target = $region48
        $region47: #{tpu_custom_call.1} parent=39 // pred_region
          %1194 = vst [vmem:[#allocation2] sm:$0xff] %v1175
          %1195 = vst [vmem:[#allocation2 + $0x8] sm:$0xff] %v1176
          %1196 = vst [vmem:[#allocation2 + $0x10] sm:$0xff] %v1177
          %1197 = vst [vmem:[#allocation2 + $0x18] sm:$0xff] %v1178
          %1198 = vst [vmem:[#allocation2 + $0x20] sm:$0xff] %v1179
          %1199 = vst [vmem:[#allocation2 + $0x28] sm:$0xff] %v1180
          %1200 = vst [vmem:[#allocation2 + $0x30] sm:$0xff] %v1181
          %1201 = vst [vmem:[#allocation2 + $0x38] sm:$0xff] %v1182
          %1202 = vst [vmem:[#allocation2 + $0x40] sm:$0xff] %v1183
          %1203 = vst [vmem:[#allocation2 + $0x48] sm:$0xff] %v1184
          %1204 = vst [vmem:[#allocation2 + $0x50] sm:$0xff] %v1185
          %1205 = vst [vmem:[#allocation2 + $0x58] sm:$0xff] %v1186
          %1206 = vst [vmem:[#allocation2 + $0x60] sm:$0xff] %v1187
          %1207 = vst [vmem:[#allocation2 + $0x68] sm:$0xff] %v1188
          %1208 = vst [vmem:[#allocation2 + $0x70] sm:$0xff] %v1189
          %1209 = vst [vmem:[#allocation2 + $0x78] sm:$0xff] %v1190
        $region48: #{tpu_custom_call.1} parent=39 // pred_fallthru
          _
        %p1210 = scmp.ne.s32.totalorder %s671, 1
        // Predicated region
        $region49: #{tpu_custom_call.1} parent=39 // pred_check
          %p1211 = pneg %p1210
        $region50: #{tpu_custom_call.1} parent=39 // pred_check_branch
          %1213 = sbr.rel (%p1211) target = $region52
        $region51: #{tpu_custom_call.1} parent=39 // pred_region
          %v1214 = vld [vmem:[#allocation2] sm:$0xff]
          %v1215 = vld [vmem:[#allocation2 + $0x8] sm:$0xff]
          %v1216 = vld [vmem:[#allocation2 + $0x10] sm:$0xff]
          %v1217 = vld [vmem:[#allocation2 + $0x18] sm:$0xff]
          %v1218 = vld [vmem:[#allocation2 + $0x20] sm:$0xff]
          %v1219 = vld [vmem:[#allocation2 + $0x28] sm:$0xff]
          %v1220 = vld [vmem:[#allocation2 + $0x30] sm:$0xff]
          %v1221 = vld [vmem:[#allocation2 + $0x38] sm:$0xff]
          %v1222 = vld [vmem:[#allocation2 + $0x40] sm:$0xff]
          %v1223 = vld [vmem:[#allocation2 + $0x48] sm:$0xff]
          %v1224 = vld [vmem:[#allocation2 + $0x50] sm:$0xff]
          %v1225 = vld [vmem:[#allocation2 + $0x58] sm:$0xff]
          %v1226 = vld [vmem:[#allocation2 + $0x60] sm:$0xff]
          %v1227 = vld [vmem:[#allocation2 + $0x68] sm:$0xff]
          %v1228 = vld [vmem:[#allocation2 + $0x70] sm:$0xff]
          %v1229 = vld [vmem:[#allocation2 + $0x78] sm:$0xff]
          %v1230 = vadd.f32 %v1214, %v1175
          %v1231 = vadd.f32 %v1215, %v1176
          %v1232 = vadd.f32 %v1216, %v1177
          %v1233 = vadd.f32 %v1217, %v1178
          %v1234 = vadd.f32 %v1218, %v1179
          %v1235 = vadd.f32 %v1219, %v1180
          %v1236 = vadd.f32 %v1220, %v1181
          %v1237 = vadd.f32 %v1221, %v1182
          %v1238 = vadd.f32 %v1222, %v1183
          %v1239 = vadd.f32 %v1223, %v1184
          %v1240 = vadd.f32 %v1224, %v1185
          %v1241 = vadd.f32 %v1225, %v1186
          %v1242 = vadd.f32 %v1226, %v1187
          %v1243 = vadd.f32 %v1227, %v1188
          %v1244 = vadd.f32 %v1228, %v1189
          %v1245 = vadd.f32 %v1229, %v1190
          %1246 = vst [vmem:[#allocation2] sm:$0xff] %v1230
          %1247 = vst [vmem:[#allocation2 + $0x8] sm:$0xff] %v1231
          %1248 = vst [vmem:[#allocation2 + $0x10] sm:$0xff] %v1232
          %1249 = vst [vmem:[#allocation2 + $0x18] sm:$0xff] %v1233
          %1250 = vst [vmem:[#allocation2 + $0x20] sm:$0xff] %v1234
          %1251 = vst [vmem:[#allocation2 + $0x28] sm:$0xff] %v1235
          %1252 = vst [vmem:[#allocation2 + $0x30] sm:$0xff] %v1236
          %1253 = vst [vmem:[#allocation2 + $0x38] sm:$0xff] %v1237
          %1254 = vst [vmem:[#allocation2 + $0x40] sm:$0xff] %v1238
          %1255 = vst [vmem:[#allocation2 + $0x48] sm:$0xff] %v1239
          %1256 = vst [vmem:[#allocation2 + $0x50] sm:$0xff] %v1240
          %1257 = vst [vmem:[#allocation2 + $0x58] sm:$0xff] %v1241
          %1258 = vst [vmem:[#allocation2 + $0x60] sm:$0xff] %v1242
          %1259 = vst [vmem:[#allocation2 + $0x68] sm:$0xff] %v1243
          %1260 = vst [vmem:[#allocation2 + $0x70] sm:$0xff] %v1244
          %1261 = vst [vmem:[#allocation2 + $0x78] sm:$0xff] %v1245
        $region52: #{tpu_custom_call.1} parent=39 // pred_fallthru
          _
        // Predicated region
        $region53: #{tpu_custom_call.1} parent=39 // pred_check
          %p1262 = pneg %p677
        $region54: #{tpu_custom_call.1} parent=39 // pred_check_branch
          %1264 = sbr.rel (%p1262) target = $region56
        $region55: #{tpu_custom_call.1} parent=39 // pred_region
          %v1265 = vld [vmem:[#allocation2] sm:$0xff]
          %v1266 = vld [vmem:[#allocation2 + $0x8] sm:$0xff]
          %v1267 = vld [vmem:[#allocation2 + $0x10] sm:$0xff]
          %v1268 = vld [vmem:[#allocation2 + $0x18] sm:$0xff]
          %v1269 = vld [vmem:[#allocation2 + $0x20] sm:$0xff]
          %v1270 = vld [vmem:[#allocation2 + $0x28] sm:$0xff]
          %v1271 = vld [vmem:[#allocation2 + $0x30] sm:$0xff]
          %v1272 = vld [vmem:[#allocation2 + $0x38] sm:$0xff]
          %v1273 = vld [vmem:[#allocation2 + $0x40] sm:$0xff]
          %v1274 = vld [vmem:[#allocation2 + $0x48] sm:$0xff]
          %v1275 = vld [vmem:[#allocation2 + $0x50] sm:$0xff]
          %v1276 = vld [vmem:[#allocation2 + $0x58] sm:$0xff]
          %v1277 = vld [vmem:[#allocation2 + $0x60] sm:$0xff]
          %v1278 = vld [vmem:[#allocation2 + $0x68] sm:$0xff]
          %v1279 = vld [vmem:[#allocation2 + $0x70] sm:$0xff]
          %v1280 = vld [vmem:[#allocation2 + $0x78] sm:$0xff]
          %vm1281 = vcmp.ge.f32.partialorder %v1265, 0.0
          %vm1282 = vcmp.ge.f32.partialorder %v1266, 0.0
          %vm1283 = vcmp.ge.f32.partialorder %v1267, 0.0
          %vm1284 = vcmp.ge.f32.partialorder %v1268, 0.0
          %vm1285 = vcmp.ge.f32.partialorder %v1269, 0.0
          %vm1286 = vcmp.ge.f32.partialorder %v1270, 0.0
          %vm1287 = vcmp.ge.f32.partialorder %v1271, 0.0
          %vm1288 = vcmp.ge.f32.partialorder %v1272, 0.0
          %vm1289 = vcmp.ge.f32.partialorder %v1273, 0.0
          %vm1290 = vcmp.ge.f32.partialorder %v1274, 0.0
          %vm1291 = vcmp.ge.f32.partialorder %v1275, 0.0
          %vm1292 = vcmp.ge.f32.partialorder %v1276, 0.0
          %vm1293 = vcmp.ge.f32.partialorder %v1277, 0.0
          %vm1294 = vcmp.ge.f32.partialorder %v1278, 0.0
          %vm1295 = vcmp.ge.f32.partialorder %v1279, 0.0
          %vm1296 = vcmp.ge.f32.partialorder %v1280, 0.0
          %v1297 = vmul.f32 %v1265, 0.01
          %v1298 = vmul.f32 %v1266, 0.01
          %v1299 = vmul.f32 %v1267, 0.01
          %v1300 = vmul.f32 %v1268, 0.01
          %v1301 = vmul.f32 %v1269, 0.01
          %v1302 = vmul.f32 %v1270, 0.01
          %v1303 = vmul.f32 %v1271, 0.01
          %v1304 = vmul.f32 %v1272, 0.01
          %v1305 = vmul.f32 %v1273, 0.01
          %v1306 = vmul.f32 %v1274, 0.01
          %v1307 = vmul.f32 %v1275, 0.01
          %v1308 = vmul.f32 %v1276, 0.01
          %v1309 = vmul.f32 %v1277, 0.01
          %v1310 = vmul.f32 %v1278, 0.01
          %v1311 = vmul.f32 %v1279, 0.01
          %v1312 = vmul.f32 %v1280, 0.01
          %v1313 = vsel %vm1281, %v1265, %v1297
          %v1314 = vsel %vm1282, %v1266, %v1298
          %v1315 = vsel %vm1283, %v1267, %v1299
          %v1316 = vsel %vm1284, %v1268, %v1300
          %v1317 = vsel %vm1285, %v1269, %v1301
          %v1318 = vsel %vm1286, %v1270, %v1302
          %v1319 = vsel %vm1287, %v1271, %v1303
          %v1320 = vsel %vm1288, %v1272, %v1304
          %v1321 = vsel %vm1289, %v1273, %v1305
          %v1322 = vsel %vm1290, %v1274, %v1306
          %v1323 = vsel %vm1291, %v1275, %v1307
          %v1324 = vsel %vm1292, %v1276, %v1308
          %v1325 = vsel %vm1293, %v1277, %v1309
          %v1326 = vsel %vm1294, %v1278, %v1310
          %v1327 = vsel %vm1295, %v1279, %v1311
          %v1328 = vsel %vm1296, %v1280, %v1312
          %v1329 = vpack.c.bf16 %v1314, %v1313
          %v1330 = vpack.c.bf16 %v1316, %v1315
          %v1331 = vpack.c.bf16 %v1318, %v1317
          %v1332 = vpack.c.bf16 %v1320, %v1319
          %v1333 = vpack.c.bf16 %v1322, %v1321
          %v1334 = vpack.c.bf16 %v1324, %v1323
          %v1335 = vpack.c.bf16 %v1326, %v1325
          %v1336 = vpack.c.bf16 %v1328, %v1327
          %v1345 = vunpack.c.l.b16 %v1329
          %v1346 = vunpack.c.h.b16 %v1329
          %v1347 = vunpack.c.l.b16 %v1330
          %v1348 = vunpack.c.h.b16 %v1330
          %v1349 = vunpack.c.l.b16 %v1331
          %v1350 = vunpack.c.h.b16 %v1331
          %v1351 = vunpack.c.l.b16 %v1332
          %v1352 = vunpack.c.h.b16 %v1332
          %v1353 = vunpack.c.l.b16 %v1333
          %v1354 = vunpack.c.h.b16 %v1333
          %v1355 = vunpack.c.l.b16 %v1334
          %v1356 = vunpack.c.h.b16 %v1334
          %v1357 = vunpack.c.l.b16 %v1335
          %v1358 = vunpack.c.h.b16 %v1335
          %v1359 = vunpack.c.l.b16 %v1336
          %v1360 = vunpack.c.h.b16 %v1336
          %v1361 = vpack.c.b16 %v1345, %v1345
          %v1362 = vpack.c.b16 %v1346, %v1346
          %v1363 = vpack.c.b16 %v1347, %v1347
          %v1364 = vpack.c.b16 %v1348, %v1348
          %v1365 = vpack.c.b16 %v1349, %v1349
          %v1366 = vpack.c.b16 %v1350, %v1350
          %v1367 = vpack.c.b16 %v1351, %v1351
          %v1368 = vpack.c.b16 %v1352, %v1352
          %v1369 = vpack.c.b16 %v1353, %v1353
          %v1370 = vpack.c.b16 %v1354, %v1354
          %v1371 = vpack.c.b16 %v1355, %v1355
          %v1372 = vpack.c.b16 %v1356, %v1356
          %v1373 = vpack.c.b16 %v1357, %v1357
          %v1374 = vpack.c.b16 %v1358, %v1358
          %v1375 = vpack.c.b16 %v1359, %v1359
          %v1376 = vpack.c.b16 %v1360, %v1360
          %1393 = vst [vmem:[%s551] sm:$0xf] %v1361
          %1394 = vst [vmem:[%s551 + $0x4] sm:$0xf] %v1362
          %1395 = vst [vmem:[%s551 + $0x8] sm:$0xf] %v1363
          %1396 = vst [vmem:[%s551 + $0xc] sm:$0xf] %v1364
          %1397 = vst [vmem:[%s551 + $0x10] sm:$0xf] %v1365
          %1398 = vst [vmem:[%s551 + $0x14] sm:$0xf] %v1366
          %1399 = vst [vmem:[%s551 + $0x18] sm:$0xf] %v1367
          %1400 = vst [vmem:[%s551 + $0x1c] sm:$0xf] %v1368
          %1401 = vst [vmem:[%s551 + $0x20] sm:$0xf] %v1369
          %1402 = vst [vmem:[%s551 + $0x24] sm:$0xf] %v1370
          %1403 = vst [vmem:[%s551 + $0x28] sm:$0xf] %v1371
          %1404 = vst [vmem:[%s551 + $0x2c] sm:$0xf] %v1372
          %1405 = vst [vmem:[%s551 + $0x30] sm:$0xf] %v1373
          %1406 = vst [vmem:[%s551 + $0x34] sm:$0xf] %v1374
          %1407 = vst [vmem:[%s551 + $0x38] sm:$0xf] %v1375
          %1408 = vst [vmem:[%s551 + $0x3c] sm:$0xf] %v1376
        $region56: #{tpu_custom_call.1} parent=39 // pred_fallthru
          _
        %s1409 = sand.u32 %s291, 1
        %s1410 = scalar_lea.sflag [#allocation7], %s1409
        %s1411 = sand.u32 %s291, 1
        %s1412 = smul.addr %s1411, 64
        %s1413 = scalar_lea.vmem [#allocation8], %s1412
        // Predicated region
        $region57: #{tpu_custom_call.1} parent=39 // pred_check
          %p1414 = pneg %p301
        $region58: #{tpu_custom_call.1} parent=39 // pred_check_branch
          %1416 = sbr.rel (%p1414) target = $region60
        $region59: #{tpu_custom_call.1} parent=39 // pred_region
          %s1417 = sshra.s32 %s34, 7
          %s1418 = sand.u32 %s34, 127
          %s1419 = sadd.s32 %s1417, 2
          %s1420 = smul.u32 %s1419, 128
          %s1421 = sshra.s32 %s34, 7
          %s1422 = sand.u32 %s34, 127
          %s1423 = sadd.s32 %s1420, %s1422
          %s1424 = sld [smem:[#allocation4 + %s1423]]
          %s1425 = sadd.s32 %s1417, 3
          %s1426 = smul.u32 %s1425, 128
          %s1427 = sadd.s32 %s1426, %s1422
          %s1428 = sld [smem:[#allocation4 + %s1427]]
          %s1429 = smul.u32 16, %s1428
          %s1431 = ssub.s32 1024, 1024
          %1432 = vsyncadd %s1410, %s1431
          %s1433 = sadd.s32 %s33, %s1429
          %s1434 = smul.addr %s1424, 16
          %s1435 = sadd.s32 %s1433, %s1434
          %s1436 = smul.addr %s1435, 64
          %s1437 = scalar_lea.hbm %s6, %s1436
          %s1438 = sshll.u32 %s1413, 4
          %s1439 = int_to_ptr.vmem [resolvable:$true] %s1438
          %1444 = dma.vmem_to_hbm [thread:$0]  %s1439, 1024, %s1437, %s1410, 64, 64, 4
        $region60: #{tpu_custom_call.1} parent=39 // pred_fallthru
          _
      $region40: #{tpu_custom_call.1} parent=5 // pred_fallthru
        _
      %p1445 = scmp.le.s32.totalorder 2, %s24
      // Predicated region
      $region61: #{tpu_custom_call.1} parent=5 // pred_check
        %p1446 = pneg %p1445
      $region62: #{tpu_custom_call.1} parent=5 // pred_check_branch
        %1448 = sbr.rel (%p1446) target = $region64
      $region63: #{tpu_custom_call.1} parent=5 // pred_region
        %s1449 = ssub.s32 %s24, 2
        // Predicated region
        $region65: #{tpu_custom_call.1} parent=63 // pred_check
          %p1450 = pneg %p307
        $region66: #{tpu_custom_call.1} parent=63 // pred_check_branch
          %1452 = sbr.rel (%p1450) target = $region68
        $region67: #{tpu_custom_call.1} parent=63 // pred_region
          %s1453 = sand.u32 %s292, 1
          %s1454 = scalar_lea.sflag [#allocation7], %s1453
          %s1455 = sand.u32 %s292, 1
          %s1456 = smul.addr %s1455, 64
          %s1457 = scalar_lea.vmem [#allocation8], %s1456
          %1458 = dma.done %s1454, 1024
        $region68: #{tpu_custom_call.1} parent=63 // pred_fallthru
          _
      $region64: #{tpu_custom_call.1} parent=5 // pred_fallthru
        _
    $region6: #{tpu_custom_call.1} parent=1 // loop_footer
      %s28 = sadd.s32 1, %s24
    $region7: #{tpu_custom_call.1} parent=1 // loop_footer_branch
      %23 = sbr.rel target = $region3
    $region8: #{tpu_custom_call.1} parent=1 // loop_exit
      _
    %1459 = vsyncpa [#allocation6], 1
    %s1460 = scalar_lea.sflag [#allocation6], 1
    %1461 = vsyncpa %s1460, 1
    %1462 = vsyncpa [#allocation7], 1
    %s1463 = scalar_lea.sflag [#allocation7], 1
    %1464 = vsyncpa %s1463, 1

</llo_original>
